<compile_context>
chip_gen: v7x
topology: tpu7x:2x2x1
jax: 0.10.0
libtpu: 0.0.40
codegen_flags: <defaults>
</compile_context>

<pallas_src>
import jax
import jax.numpy as jnp
from jax.experimental import pallas as pl
from jax.experimental.pallas import tpu as pltpu


def _round_up(x, m):
    return ((x + m - 1) // m) * m


# ----------------------------- Pallas kernel --------------------------------

def _rbf_kernel(x_ref, locT_ref, stats_ref, o_ref):
    # x_ref:     (tm, F)  input rows, original dtype (cast after DMA)
    # locT_ref:  (F, tn)  holds -2 * loc^T for this centroid tile
    # stats_ref: (2, tn)  row 0 = ||loc||^2, row 1 = 1/scale
    # o_ref:     (tm, tn)
    x = x_ref[...].astype(jnp.float32)
    xsq = jnp.sum(x * x, axis=-1, keepdims=True)                  # (tm, 1)
    xl = jnp.dot(x, locT_ref[...],                                 # (tm, tn) MXU
                 preferred_element_type=jnp.float32)
    stats = stats_ref[...]                                         # (2, tn)
    d2 = jnp.maximum(xsq + stats[0:1, :] + xl, 0.0)                # VPU
    d = jnp.sqrt(d2)                                               # EUP
    o_ref[...] = jnp.exp(-d * stats[1:2, :]).astype(o_ref.dtype)   # EUP + store


# ------------------------------ tile selection -------------------------------

def _vmem_budget_bytes():
    try:
        cap = pltpu.get_tpu_info().vmem_capacity_bytes
    except Exception:
        cap = 64 * 1024 * 1024          # conservative (v7x-sized) fallback
    # Use ~half of physical VMEM: ~64 MiB on v5e/v6e, ~32 MiB on v7x.
    return max(16 * 1024 * 1024, cap // 2)


def _pick_tiles(B, F, Cp, x_itemsize, budget):
    # Centroid tile: lane-dense; prefer 256/512 (full MXU N-width on v6e/v7x).
    tn = 128
    for cand in (512, 256):
        if Cp % cand == 0:
            tn = cand
            break

    def vmem_bytes(tm_, tn_):
        return (2 * tm_ * F * x_itemsize        # x row tile (double buffered)
                + 2 * F * tn_ * 4               # -2*loc^T (worst case 2 bufs)
                + 2 * 2 * tn_ * 4               # stats
                + 2 * tm_ * tn_ * 4)            # output tile (double buffered)

    # Shrink the centroid tile first if a huge F makes loc^T dominate.
    while tn > 128 and vmem_bytes(8, tn) > budget:
        tn //= 2

    # Row tile: as large as possible (<=512, multiple of 8) within the budget;
    # no rounding of B up to tm -> at most one ragged block, no pad copy.
    tm = min(512, _round_up(max(B, 1), 8))
    while tm > 8 and vmem_bytes(tm, tn) > budget:
        tm = max(8, _round_up(tm // 2, 8))
    return tm, tn


# ------------------------------- wrapper -------------------------------------

def rbf_pallas(x, loc, scale):
    """Forward of RBF: exp(-||x_b - loc_c||_2 / scale_c).  Returns (B, C) f32."""
    if x.ndim > 2:
        x = x.reshape(x.shape[0], -1)
    B, F = x.shape
    C, Fl = loc.shape
    assert F == Fl, "centroid feature dim must match flattened input dim"

    loc_f32 = loc.astype(jnp.float32)
    scale_f32 = scale.astype(jnp.float32)

    # Lane-dense centroid padding; 256-align when the matmul is likely the
    # binding unit (large C and F) to use the full 256-wide MXU N on v6e/v7x.
    if C > 256 and F >= 512:
        Cp = _round_up(C, 256)
    else:
        Cp = _round_up(max(C, 1), 128)

    # One-time weight-style transforms. Padded columns: locT=0, ||loc||^2=0,
    # 1/scale=1 -> padded outputs are finite junk and sliced off below.
    locT = jnp.zeros((F, Cp), jnp.float32).at[:, :C].set(-2.0 * loc_f32.T)
    loc_sq = jnp.zeros((Cp,), jnp.float32).at[:C].set(
        jnp.sum(loc_f32 * loc_f32, axis=1))
    inv_scale = jnp.ones((Cp,), jnp.float32).at[:C].set(1.0 / scale_f32)
    stats = jnp.stack([loc_sq, inv_scale], axis=0)                 # (2, Cp)

    budget = _vmem_budget_bytes()
    tm, tn = _pick_tiles(B, F, Cp, x.dtype.itemsize, budget)
    n_rt = pl.cdiv(B, tm)      # ragged last row block (masked store, no pad)
    n_ct = Cp // tn

    x_bytes = n_ct * B * F * x.dtype.itemsize
    cost = pl.CostEstimate(
        flops=2 * B * F * Cp + 4 * B * Cp + 2 * B * F,
        transcendentals=2 * B * Cp,                    # sqrt + exp per output
        bytes_accessed=x_bytes + 4 * (F * Cp + 2 * Cp + B * Cp),
    )

    def call(invariant_mode):
        return pl.pallas_call(
            _rbf_kernel,
            out_shape=jax.ShapeDtypeStruct((B, Cp), jnp.float32),
            grid=(n_ct, n_rt),           # centroid tiles outer, row tiles inner
            in_specs=[
                pl.BlockSpec((tm, F), lambda j, i: (i, 0)),        # x rows
                pl.BlockSpec((F, tn), lambda j, i: (0, j),         # -2*loc^T
                             pipeline_mode=invariant_mode),
                pl.BlockSpec((2, tn), lambda j, i: (0, j),         # stats
                             pipeline_mode=invariant_mode),
            ],
            out_specs=pl.BlockSpec((tm, tn), lambda j, i: (i, j)),
            compiler_params=pltpu.CompilerParams(
                dimension_semantics=("parallel", "parallel"),
                vmem_limit_bytes=int(budget)),
            cost_estimate=cost,
        )(x, locT, stats)

    try:
        # Single-buffer the row-invariant centroid operands (their block only
        # changes with the outer grid axis): halves their VMEM footprint.
        out = call(pl.Buffered(buffer_count=1))
    except Exception:
        out = call(None)     # fall back to default double buffering

    return out[:, :C]


# ----------------------------- pure-JAX reference ----------------------------

def rbf_ref(x, loc, scale):
    if x.ndim > 2:
        x = x.reshape(x.shape[0], -1)
    diff = x[:, None, :] - loc[None, :, :]             # (B, C, F)
    d = jnp.sqrt(jnp.sum(diff * diff, axis=-1))        # (B, C)
    return jnp.exp(-d / scale[None, :])


# --------------------------------- main --------------------------------------

if __name__ == "__main__":
    key = jax.random.PRNGKey(0)
    k1, k2, k3, k4 = jax.random.split(key, 4)

    # Case 1: image-like input (flattened inside forward), 8 centroids.
    x = jax.random.normal(k1, (2, 4, 16, 16), jnp.float32)          # (B, C, H, W)
    centroids = jax.random.normal(k2, (8, 4, 16, 16), jnp.float32)  # 8 centroids
    loc = centroids.reshape(8, -1)                                  # (8, 1024)
    scale = 10.0 * jnp.ones((8,), jnp.float32)

    out1 = jax.block_until_ready(rbf_pallas(x, loc, scale))
    ref1 = rbf_ref(x, loc, scale)
    assert out1.shape == (2, 8)
    assert jnp.allclose(out1, ref1, atol=1e-4, rtol=1e-4)

    # Case 2: already-2D input, odd sizes (exercises ragged row block + C pad).
    x2 = jax.random.normal(k3, (13, 32), jnp.float32)
    loc2 = jax.random.normal(k4, (5, 32), jnp.float32)
    scale2 = 10.0 * jnp.ones((5,), jnp.float32)

    out2 = jax.block_until_ready(rbf_pallas(x2, loc2, scale2))
    ref2 = rbf_ref(x2, loc2, scale2)
    assert out2.shape == (13, 5)
    assert jnp.allclose(out2, ref2, atol=1e-4, rtol=1e-4)

    print("KERNEL_OK")
</pallas_src>

<mosaic_0001>
module attributes {stable_mosaic.version = 11 : i64} {
  func.func @_rbf_kernel(%arg0: i32, %arg1: i32, %arg2: memref<8x1024xf32, #tpu.memory_space<vmem>>, %arg3: memref<1024x128xf32, #tpu.memory_space<vmem>>, %arg4: memref<2x128xf32, #tpu.memory_space<vmem>>, %arg5: memref<8x128xf32, #tpu.memory_space<vmem>>) attributes {dimension_semantics = [#tpu.dimension_semantics<parallel>, #tpu.dimension_semantics<parallel>], iteration_bounds = array<i64: 1, 1>, scalar_prefetch = 0 : i64, scratch_operands = 0 : i64, tpu.core_type = #tpu.core_type<tc>, window_params = [{transform_indices = @transform_0, window_bounds = array<i64: 8, 1024>}, {pipeline_mode = #tpu.pipeline_mode<synchronous>, transform_indices = @transform_1, window_bounds = array<i64: 1024, 128>}, {pipeline_mode = #tpu.pipeline_mode<synchronous>, transform_indices = @transform_2, window_bounds = array<i64: 2, 128>}, {transform_indices = @transform_3, window_bounds = array<i64: 8, 128>}]} {
    %c0 = arith.constant 0 : index
    %c0_0 = arith.constant 0 : index
    %0 = vector.load %arg2[%c0, %c0_0] : memref<8x1024xf32, #tpu.memory_space<vmem>>, vector<8x1024xf32>
    %1 = arith.mulf %0, %0 : vector<8x1024xf32>
    %cst = arith.constant dense<0.000000e+00> : vector<8xf32>
    %2 = vector.multi_reduction <add>, %1, %cst [1] : vector<8x1024xf32> to vector<8xf32>
    %3 = vector.shape_cast %2 : vector<8xf32> to vector<8x1xf32>
    %c0_1 = arith.constant 0 : index
    %c0_2 = arith.constant 0 : index
    %4 = vector.load %arg3[%c0_1, %c0_2] : memref<1024x128xf32, #tpu.memory_space<vmem>>, vector<1024x128xf32>
    %cst_3 = arith.constant dense<0.000000e+00> : vector<8x128xf32>
    %5 = tpu.matmul %0, %4, %cst_3 {dimension_numbers = #tpu.dot_dimension_numbers<[1], [0], [0], [1], [0, 0, 1, 1], [], []>} : vector<8x1024xf32>, vector<1024x128xf32>, vector<8x128xf32> -> vector<8x128xf32>
    %c0_4 = arith.constant 0 : index
    %c0_5 = arith.constant 0 : index
    %6 = vector.load %arg4[%c0_4, %c0_5] : memref<2x128xf32, #tpu.memory_space<vmem>>, vector<2x128xf32>
    %7 = vector.extract_strided_slice %6 {offsets = [0, 0], sizes = [1, 128], strides = [1, 1]} : vector<2x128xf32> to vector<1x128xf32>
    %8 = vector.broadcast %3 : vector<8x1xf32> to vector<8x128xf32>
    %9 = vector.broadcast %7 : vector<1x128xf32> to vector<8x128xf32>
    %10 = arith.addf %8, %9 : vector<8x128xf32>
    %11 = arith.addf %10, %5 : vector<8x128xf32>
    %cst_6 = arith.constant 0.000000e+00 : f32
    %12 = vector.broadcast %cst_6 : f32 to vector<8x128xf32>
    %13 = arith.maximumf %11, %12 : vector<8x128xf32>
    %14 = math.sqrt %13 : vector<8x128xf32>
    %cst_7 = arith.constant 0.000000e+00 : f32
    %15 = vector.broadcast %cst_7 : f32 to vector<8x128xf32>
    %16 = arith.subf %15, %14 : vector<8x128xf32>
    %17 = vector.extract_strided_slice %6 {offsets = [1, 0], sizes = [1, 128], strides = [1, 1]} : vector<2x128xf32> to vector<1x128xf32>
    %18 = vector.broadcast %17 : vector<1x128xf32> to vector<8x128xf32>
    %19 = arith.mulf %16, %18 : vector<8x128xf32>
    %20 = math.exp %19 : vector<8x128xf32>
    %c0_8 = arith.constant 0 : index
    %c0_9 = arith.constant 0 : index
    %21 = vector.load %arg5[%c0_8, %c0_9] : memref<8x128xf32, #tpu.memory_space<vmem>>, vector<8x128xf32>
    tpu.vector_store %arg5[%c0_8, %c0_9], %20 {strides = array<i32>} : memref<8x128xf32, #tpu.memory_space<vmem>>, vector<8x128xf32>,
    return
  }
  func.func @transform_0(%arg0: i32, %arg1: i32) -> (i32, i32) {
    %c0_i32 = arith.constant 0 : i32
    %c0_i32_0 = arith.constant 0 : i32
    return %arg1, %c0_i32 : i32, i32
  }
  func.func @transform_1(%arg0: i32, %arg1: i32) -> (i32, i32) {
    %c0_i32 = arith.constant 0 : i32
    %c0_i32_0 = arith.constant 0 : i32
    return %c0_i32, %arg0 : i32, i32
  }
  func.func @transform_2(%arg0: i32, %arg1: i32) -> (i32, i32) {
    %c0_i32 = arith.constant 0 : i32
    %c0_i32_0 = arith.constant 0 : i32
    return %c0_i32, %arg0 : i32, i32
  }
  func.func @transform_3(%arg0: i32, %arg1: i32) -> (i32, i32) {
    %c0_i32 = arith.constant 0 : i32
    return %arg1, %arg0 : i32, i32
  }
}

module attributes {stable_mosaic.version = 11 : i64} {
  func.func @_rbf_kernel(%arg0: i32, %arg1: i32, %arg2: memref<8x1024xf32, #tpu.memory_space<vmem>>, %arg3: memref<1024x128xf32, #tpu.memory_space<vmem>>, %arg4: memref<2x128xf32, #tpu.memory_space<vmem>>, %arg5: memref<8x128xf32, #tpu.memory_space<vmem>>) attributes {dimension_semantics = [#tpu.dimension_semantics<parallel>, #tpu.dimension_semantics<parallel>], iteration_bounds = array<i64: 1, 1>, scalar_prefetch = 0 : i64, scratch_operands = 0 : i64, tpu.core_type = #tpu.core_type<tc>, window_params = [{transform_indices = @transform_0, window_bounds = array<i64: 8, 1024>}, {transform_indices = @transform_1, window_bounds = array<i64: 1024, 128>}, {transform_indices = @transform_2, window_bounds = array<i64: 2, 128>}, {transform_indices = @transform_3, window_bounds = array<i64: 8, 128>}]} {
    %c0 = arith.constant 0 : index
    %c0_0 = arith.constant 0 : index
    %0 = vector.load %arg2[%c0, %c0_0] : memref<8x1024xf32, #tpu.memory_space<vmem>>, vector<8x1024xf32>
    %1 = arith.mulf %0, %0 : vector<8x1024xf32>
    %cst = arith.constant dense<0.000000e+00> : vector<8xf32>
    %2 = vector.multi_reduction <add>, %1, %cst [1] : vector<8x1024xf32> to vector<8xf32>
    %3 = vector.shape_cast %2 : vector<8xf32> to vector<8x1xf32>
    %c0_1 = arith.constant 0 : index
    %c0_2 = arith.constant 0 : index
    %4 = vector.load %arg3[%c0_1, %c0_2] : memref<1024x128xf32, #tpu.memory_space<vmem>>, vector<1024x128xf32>
    %cst_3 = arith.constant dense<0.000000e+00> : vector<8x128xf32>
    %5 = tpu.matmul %0, %4, %cst_3 {dimension_numbers = #tpu.dot_dimension_numbers<[1], [0], [0], [1], [0, 0, 1, 1], [], []>} : vector<8x1024xf32>, vector<1024x128xf32>, vector<8x128xf32> -> vector<8x128xf32>
    %c0_4 = arith.constant 0 : index
    %c0_5 = arith.constant 0 : index
    %6 = vector.load %arg4[%c0_4, %c0_5] : memref<2x128xf32, #tpu.memory_space<vmem>>, vector<2x128xf32>
    %7 = vector.extract_strided_slice %6 {offsets = [0, 0], sizes = [1, 128], strides = [1, 1]} : vector<2x128xf32> to vector<1x128xf32>
    %8 = vector.broadcast %3 : vector<8x1xf32> to vector<8x128xf32>
    %9 = vector.broadcast %7 : vector<1x128xf32> to vector<8x128xf32>
    %10 = arith.addf %8, %9 : vector<8x128xf32>
    %11 = arith.addf %10, %5 : vector<8x128xf32>
    %cst_6 = arith.constant 0.000000e+00 : f32
    %12 = vector.broadcast %cst_6 : f32 to vector<8x128xf32>
    %13 = arith.maximumf %11, %12 : vector<8x128xf32>
    %14 = math.sqrt %13 : vector<8x128xf32>
    %cst_7 = arith.constant 0.000000e+00 : f32
    %15 = vector.broadcast %cst_7 : f32 to vector<8x128xf32>
    %16 = arith.subf %15, %14 : vector<8x128xf32>
    %17 = vector.extract_strided_slice %6 {offsets = [1, 0], sizes = [1, 128], strides = [1, 1]} : vector<2x128xf32> to vector<1x128xf32>
    %18 = vector.broadcast %17 : vector<1x128xf32> to vector<8x128xf32>
    %19 = arith.mulf %16, %18 : vector<8x128xf32>
    %20 = math.exp %19 : vector<8x128xf32>
    %c0_8 = arith.constant 0 : index
    %c0_9 = arith.constant 0 : index
    %21 = vector.load %arg5[%c0_8, %c0_9] : memref<8x128xf32, #tpu.memory_space<vmem>>, vector<8x128xf32>
    tpu.vector_store %arg5[%c0_8, %c0_9], %20 {strides = array<i32>} : memref<8x128xf32, #tpu.memory_space<vmem>>, vector<8x128xf32>,
    return
  }
  func.func @transform_0(%arg0: i32, %arg1: i32) -> (i32, i32) {
    %c0_i32 = arith.constant 0 : i32
    %c0_i32_0 = arith.constant 0 : i32
    return %arg1, %c0_i32 : i32, i32
  }
  func.func @transform_1(%arg0: i32, %arg1: i32) -> (i32, i32) {
    %c0_i32 = arith.constant 0 : i32
    %c0_i32_0 = arith.constant 0 : i32
    return %c0_i32, %arg0 : i32, i32
  }
  func.func @transform_2(%arg0: i32, %arg1: i32) -> (i32, i32) {
    %c0_i32 = arith.constant 0 : i32
    %c0_i32_0 = arith.constant 0 : i32
    return %c0_i32, %arg0 : i32, i32
  }
  func.func @transform_3(%arg0: i32, %arg1: i32) -> (i32, i32) {
    %c0_i32 = arith.constant 0 : i32
    return %arg1, %arg0 : i32, i32
  }
}

</mosaic_0001>

<llo_original>
// kernel: tpu_custom_call.1
$region0: #{tpu_custom_call.1}
  #allocation0 [shape = 'u32[]', space=smem, size = 0x4, offset = 0x4, fixed_abs, tag = 'smem constant byte address 0x4 - core index']
  #allocation1 [shape = 'u32[144,128]{1,0:T(1,128)}', space=vmem, size = 0x12000, scoped, tag = 'internal scratch']
  %s0 = inlined_call_operand.hbm [shape: f32[2,1024], index: 0, kind: input, shape index: {}]
  %s1 = inlined_call_operand.hbm [shape: f32[1024,128], index: 1, kind: input, shape index: {}]
  %s2 = inlined_call_operand.vmem [shape: f32[2,128], index: 2, kind: input, shape index: {}]
  %s3 = inlined_call_operand.hbm [shape: f32[2,128], index: 3, kind: output, shape index: {}]
  %s4 = sld [smem:[#allocation0]]
  $region30: #{tpu_custom_call.1} parent=0
    _
  %s6 = ssub.s32 1, %s4
  %s7 = scalar_select 0, %s6, %s4
  $region1: #{tpu_custom_call.1} parent=0
    #allocation2 [shape = 'u8[32768]{0}', space=vmem, size = 0x8000, scoped, tag = 'input window, operand 0, single buffered']
    #allocation3 [shape = 's32[1]{0}', space=sflag, size = 0x4, scoped, tag = 'scoped memory for tpu_custom_call.1']
    #allocation4 [shape = 's32[1]{0}', space=sflag, size = 0x4, scoped, tag = 'scoped memory for tpu_custom_call.1']
    #allocation5 [shape = 'u8[524288]{0}', space=vmem, size = 0x80000, scoped, tag = 'input window, operand 1, single buffered']
    #allocation6 [shape = 's32[1]{0}', space=sflag, size = 0x4, scoped, tag = 'scoped memory for tpu_custom_call.1']
    #allocation7 [shape = 'u8[4096]{0}', space=vmem, size = 0x1000, scoped, tag = 'output window, operand 0, single buffered']
    %8 = vsyncpa [#allocation3], 0
    %9 = vsyncpa [#allocation6], 0
    %10 = vsyncpa [#allocation4], 0
    // Predicated region
    $region2: #{tpu_custom_call.1} parent=1 // pred_check
      _
    $region3: #{tpu_custom_call.1} parent=1 // pred_check_branch
      %12 = sbr.rel (0) target = $region5
    $region4: #{tpu_custom_call.1} parent=1 // pred_region
      %s14 = ssub.s32 1024, 256
      %15 = vsyncadd [#allocation3], %s14
      %s16 = sshll.u32 [#allocation2], 4
      %s17 = int_to_ptr.vmem [resolvable:$true] %s16
      %22 = dma.hbm_to_vmem [thread:$0]  %s0, 256, %s17, [#allocation3], 256, 256, 16
    $region5: #{tpu_custom_call.1} parent=1 // pred_fallthru
      _
    // Predicated region
    $region6: #{tpu_custom_call.1} parent=1 // pred_check
      _
    $region7: #{tpu_custom_call.1} parent=1 // pred_check_branch
      %24 = sbr.rel (0) target = $region9
    $region8: #{tpu_custom_call.1} parent=1 // pred_region
      %s26 = ssub.s32 16384, 16384
      %27 = vsyncadd [#allocation6], %s26
      %s28 = sshll.u32 [#allocation5], 4
      %s29 = int_to_ptr.vmem [resolvable:$true] %s28
      %34 = dma.hbm_to_vmem [thread:$0]  %s1, 16384, %s29, [#allocation6], 128, 128, 8
    $region9: #{tpu_custom_call.1} parent=1 // pred_fallthru
      _
    // Predicated region
    $region10: #{tpu_custom_call.1} parent=1 // pred_check
      _
    $region11: #{tpu_custom_call.1} parent=1 // pred_check_branch
      %36 = sbr.rel (0) target = $region13
    $region12: #{tpu_custom_call.1} parent=1 // pred_region
      _
    $region13: #{tpu_custom_call.1} parent=1 // pred_fallthru
      _
    // Predicated region
    $region14: #{tpu_custom_call.1} parent=1 // pred_check
      _
    $region15: #{tpu_custom_call.1} parent=1 // pred_check_branch
      %38 = sbr.rel (0) target = $region17
    $region16: #{tpu_custom_call.1} parent=1 // pred_region
      %39 = dma.done [#allocation3], 1024
    $region17: #{tpu_custom_call.1} parent=1 // pred_fallthru
      _
    // Predicated region
    $region18: #{tpu_custom_call.1} parent=1 // pred_check
      _
    $region19: #{tpu_custom_call.1} parent=1 // pred_check_branch
      %41 = sbr.rel (0) target = $region21
    $region20: #{tpu_custom_call.1} parent=1 // pred_region
      %42 = dma.done [#allocation6], 16384
    $region21: #{tpu_custom_call.1} parent=1 // pred_fallthru
      _
    %v43 = vld [vmem:[#allocation2] sm:$0xff]
    %v44 = vld [vmem:[#allocation2 + $0x8] sm:$0xff]
    %v45 = vld [vmem:[#allocation2 + $0x10] sm:$0xff]
    %v46 = vld [vmem:[#allocation2 + $0x18] sm:$0xff]
    %v47 = vld [vmem:[#allocation2 + $0x20] sm:$0xff]
    %v48 = vld [vmem:[#allocation2 + $0x28] sm:$0xff]
    %v49 = vld [vmem:[#allocation2 + $0x30] sm:$0xff]
    %v50 = vld [vmem:[#allocation2 + $0x38] sm:$0xff]
    %v51 = vmul.f32 %v43, %v43
    %v52 = vmul.f32 %v44, %v44
    %v53 = vmul.f32 %v45, %v45
    %v54 = vmul.f32 %v46, %v46
    %v55 = vmul.f32 %v47, %v47
    %v56 = vmul.f32 %v48, %v48
    %v57 = vmul.f32 %v49, %v49
    %v58 = vmul.f32 %v50, %v50
    %v67 = vcombine.low %v51, %v53
    %v68 = vcombine.high %v51, %v53
    %v69 = vcombine.low %v55, %v57
    %v70 = vcombine.high %v55, %v57
    %v72 = vunpack.c.l.s4 1983009808
    %v73 = vunpack.c.0.s8 %v72
    %v74 = vlaneseq
    %v75 = vshrl.u32 %v74, 7
    %v76 = vsub.s32 %v73, %v75
    %v77 = vrot.slane %v67, %v76
    %v79 = vunpack.c.l.s4 1983009808
    %v80 = vunpack.c.0.s8 %v79
    %v81 = vlaneseq
    %v82 = vshrl.u32 %v81, 7
    %v83 = vsub.s32 %v80, %v82
    %v84 = vrot.slane %v68, %v83
    %v86 = vunpack.c.l.s4 1983009808
    %v87 = vunpack.c.0.s8 %v86
    %v88 = vlaneseq
    %v89 = vshrl.u32 %v88, 7
    %v90 = vsub.s32 %v87, %v89
    %v91 = vrot.slane %v69, %v90
    %v93 = vunpack.c.l.s4 1983009808
    %v94 = vunpack.c.0.s8 %v93
    %v95 = vlaneseq
    %v96 = vshrl.u32 %v95, 7
    %v97 = vsub.s32 %v94, %v96
    %v98 = vrot.slane %v70, %v97
    %v99 = vcombine.low %v77, %v91
    %v100 = vcombine.high %v77, %v91
    %v101 = vcombine.low %v84, %v98
    %v102 = vcombine.high %v84, %v98
    %v103 = vcombine.low %v52, %v54
    %v104 = vcombine.high %v52, %v54
    %v105 = vcombine.low %v56, %v58
    %v106 = vcombine.high %v56, %v58
    %v108 = vunpack.c.l.s4 1983009808
    %v109 = vunpack.c.0.s8 %v108
    %v110 = vlaneseq
    %v111 = vshrl.u32 %v110, 7
    %v112 = vsub.s32 %v109, %v111
    %v113 = vrot.slane %v103, %v112
    %v115 = vunpack.c.l.s4 1983009808
    %v116 = vunpack.c.0.s8 %v115
    %v117 = vlaneseq
    %v118 = vshrl.u32 %v117, 7
    %v119 = vsub.s32 %v116, %v118
    %v120 = vrot.slane %v104, %v119
    %v122 = vunpack.c.l.s4 1983009808
    %v123 = vunpack.c.0.s8 %v122
    %v124 = vlaneseq
    %v125 = vshrl.u32 %v124, 7
    %v126 = vsub.s32 %v123, %v125
    %v127 = vrot.slane %v105, %v126
    %v129 = vunpack.c.l.s4 1983009808
    %v130 = vunpack.c.0.s8 %v129
    %v131 = vlaneseq
    %v132 = vshrl.u32 %v131, 7
    %v133 = vsub.s32 %v130, %v132
    %v134 = vrot.slane %v106, %v133
    %v135 = vcombine.low %v113, %v127
    %v136 = vcombine.high %v113, %v127
    %v137 = vcombine.low %v120, %v134
    %v138 = vcombine.high %v120, %v134
    %v147 = vadd.f32 %v99, %v100
    %v148 = vadd.f32 %v147, %v101
    %v149 = vadd.f32 %v148, %v102
    %v150 = vadd.f32 %v149, %v135
    %v151 = vadd.f32 %v150, %v136
    %v152 = vadd.f32 %v151, %v137
    %v153 = vadd.f32 %v152, %v138
    %154 = vadd.xlane.f32.xlu0 %v153
    %v155 = vpop.xlane.xlu0 %154
    %v156 = vld [vmem:[#allocation5] sm:$0xff]
    %v157 = vld [vmem:[#allocation5 + $0x8] sm:$0xff]
    %v158 = vld [vmem:[#allocation5 + $0x10] sm:$0xff]
    %v159 = vld [vmem:[#allocation5 + $0x18] sm:$0xff]
    %v160 = vld [vmem:[#allocation5 + $0x20] sm:$0xff]
    %v161 = vld [vmem:[#allocation5 + $0x28] sm:$0xff]
    %v162 = vld [vmem:[#allocation5 + $0x30] sm:$0xff]
    %v163 = vld [vmem:[#allocation5 + $0x38] sm:$0xff]
    %v164 = vld [vmem:[#allocation5 + $0x40] sm:$0xff]
    %v165 = vld [vmem:[#allocation5 + $0x48] sm:$0xff]
    %v166 = vld [vmem:[#allocation5 + $0x50] sm:$0xff]
    %v167 = vld [vmem:[#allocation5 + $0x58] sm:$0xff]
    %v168 = vld [vmem:[#allocation5 + $0x60] sm:$0xff]
    %v169 = vld [vmem:[#allocation5 + $0x68] sm:$0xff]
    %v170 = vld [vmem:[#allocation5 + $0x70] sm:$0xff]
    %v171 = vld [vmem:[#allocation5 + $0x78] sm:$0xff]
    %v172 = vld [vmem:[#allocation5 + $0x80] sm:$0xff]
    %v173 = vld [vmem:[#allocation5 + $0x88] sm:$0xff]
    %v174 = vld [vmem:[#allocation5 + $0x90] sm:$0xff]
    %v175 = vld [vmem:[#allocation5 + $0x98] sm:$0xff]
    %v176 = vld [vmem:[#allocation5 + $0xa0] sm:$0xff]
    %v177 = vld [vmem:[#allocation5 + $0xa8] sm:$0xff]
    %v178 = vld [vmem:[#allocation5 + $0xb0] sm:$0xff]
    %v179 = vld [vmem:[#allocation5 + $0xb8] sm:$0xff]
    %v180 = vld [vmem:[#allocation5 + $0xc0] sm:$0xff]
    %v181 = vld [vmem:[#allocation5 + $0xc8] sm:$0xff]
    %v182 = vld [vmem:[#allocation5 + $0xd0] sm:$0xff]
    %v183 = vld [vmem:[#allocation5 + $0xd8] sm:$0xff]
    %v184 = vld [vmem:[#allocation5 + $0xe0] sm:$0xff]
    %v185 = vld [vmem:[#allocation5 + $0xe8] sm:$0xff]
    %v186 = vld [vmem:[#allocation5 + $0xf0] sm:$0xff]
    %v187 = vld [vmem:[#allocation5 + $0xf8] sm:$0xff]
    %v188 = vld [vmem:[#allocation5 + $0x100] sm:$0xff]
    %v189 = vld [vmem:[#allocation5 + $0x108] sm:$0xff]
    %v190 = vld [vmem:[#allocation5 + $0x110] sm:$0xff]
    %v191 = vld [vmem:[#allocation5 + $0x118] sm:$0xff]
    %v192 = vld [vmem:[#allocation5 + $0x120] sm:$0xff]
    %v193 = vld [vmem:[#allocation5 + $0x128] sm:$0xff]
    %v194 = vld [vmem:[#allocation5 + $0x130] sm:$0xff]
    %v195 = vld [vmem:[#allocation5 + $0x138] sm:$0xff]
    %v196 = vld [vmem:[#allocation5 + $0x140] sm:$0xff]
    %v197 = vld [vmem:[#allocation5 + $0x148] sm:$0xff]
    %v198 = vld [vmem:[#allocation5 + $0x150] sm:$0xff]
    %v199 = vld [vmem:[#allocation5 + $0x158] sm:$0xff]
    %v200 = vld [vmem:[#allocation5 + $0x160] sm:$0xff]
    %v201 = vld [vmem:[#allocation5 + $0x168] sm:$0xff]
    %v202 = vld [vmem:[#allocation5 + $0x170] sm:$0xff]
    %v203 = vld [vmem:[#allocation5 + $0x178] sm:$0xff]
    %v204 = vld [vmem:[#allocation5 + $0x180] sm:$0xff]
    %v205 = vld [vmem:[#allocation5 + $0x188] sm:$0xff]
    %v206 = vld [vmem:[#allocation5 + $0x190] sm:$0xff]
    %v207 = vld [vmem:[#allocation5 + $0x198] sm:$0xff]
    %v208 = vld [vmem:[#allocation5 + $0x1a0] sm:$0xff]
    %v209 = vld [vmem:[#allocation5 + $0x1a8] sm:$0xff]
    %v210 = vld [vmem:[#allocation5 + $0x1b0] sm:$0xff]
    %v211 = vld [vmem:[#allocation5 + $0x1b8] sm:$0xff]
    %v212 = vld [vmem:[#allocation5 + $0x1c0] sm:$0xff]
    %v213 = vld [vmem:[#allocation5 + $0x1c8] sm:$0xff]
    %v214 = vld [vmem:[#allocation5 + $0x1d0] sm:$0xff]
    %v215 = vld [vmem:[#allocation5 + $0x1d8] sm:$0xff]
    %v216 = vld [vmem:[#allocation5 + $0x1e0] sm:$0xff]
    %v217 = vld [vmem:[#allocation5 + $0x1e8] sm:$0xff]
    %v218 = vld [vmem:[#allocation5 + $0x1f0] sm:$0xff]
    %v219 = vld [vmem:[#allocation5 + $0x1f8] sm:$0xff]
    %v220 = vld [vmem:[#allocation5 + $0x200] sm:$0xff]
    %v221 = vld [vmem:[#allocation5 + $0x208] sm:$0xff]
    %v222 = vld [vmem:[#allocation5 + $0x210] sm:$0xff]
    %v223 = vld [vmem:[#allocation5 + $0x218] sm:$0xff]
    %v224 = vld [vmem:[#allocation5 + $0x220] sm:$0xff]
    %v225 = vld [vmem:[#allocation5 + $0x228] sm:$0xff]
    %v226 = vld [vmem:[#allocation5 + $0x230] sm:$0xff]
    %v227 = vld [vmem:[#allocation5 + $0x238] sm:$0xff]
    %v228 = vld [vmem:[#allocation5 + $0x240] sm:$0xff]
    %v229 = vld [vmem:[#allocation5 + $0x248] sm:$0xff]
    %v230 = vld [vmem:[#allocation5 + $0x250] sm:$0xff]
    %v231 = vld [vmem:[#allocation5 + $0x258] sm:$0xff]
    %v232 = vld [vmem:[#allocation5 + $0x260] sm:$0xff]
    %v233 = vld [vmem:[#allocation5 + $0x268] sm:$0xff]
    %v234 = vld [vmem:[#allocation5 + $0x270] sm:$0xff]
    %v235 = vld [vmem:[#allocation5 + $0x278] sm:$0xff]
    %v236 = vld [vmem:[#allocation5 + $0x280] sm:$0xff]
    %v237 = vld [vmem:[#allocation5 + $0x288] sm:$0xff]
    %v238 = vld [vmem:[#allocation5 + $0x290] sm:$0xff]
    %v239 = vld [vmem:[#allocation5 + $0x298] sm:$0xff]
    %v240 = vld [vmem:[#allocation5 + $0x2a0] sm:$0xff]
    %v241 = vld [vmem:[#allocation5 + $0x2a8] sm:$0xff]
    %v242 = vld [vmem:[#allocation5 + $0x2b0] sm:$0xff]
    %v243 = vld [vmem:[#allocation5 + $0x2b8] sm:$0xff]
    %v244 = vld [vmem:[#allocation5 + $0x2c0] sm:$0xff]
    %v245 = vld [vmem:[#allocation5 + $0x2c8] sm:$0xff]
    %v246 = vld [vmem:[#allocation5 + $0x2d0] sm:$0xff]
    %v247 = vld [vmem:[#allocation5 + $0x2d8] sm:$0xff]
    %v248 = vld [vmem:[#allocation5 + $0x2e0] sm:$0xff]
    %v249 = vld [vmem:[#allocation5 + $0x2e8] sm:$0xff]
    %v250 = vld [vmem:[#allocation5 + $0x2f0] sm:$0xff]
    %v251 = vld [vmem:[#allocation5 + $0x2f8] sm:$0xff]
    %v252 = vld [vmem:[#allocation5 + $0x300] sm:$0xff]
    %v253 = vld [vmem:[#allocation5 + $0x308] sm:$0xff]
    %v254 = vld [vmem:[#allocation5 + $0x310] sm:$0xff]
    %v255 = vld [vmem:[#allocation5 + $0x318] sm:$0xff]
    %v256 = vld [vmem:[#allocation5 + $0x320] sm:$0xff]
    %v257 = vld [vmem:[#allocation5 + $0x328] sm:$0xff]
    %v258 = vld [vmem:[#allocation5 + $0x330] sm:$0xff]
    %v259 = vld [vmem:[#allocation5 + $0x338] sm:$0xff]
    %v260 = vld [vmem:[#allocation5 + $0x340] sm:$0xff]
    %v261 = vld [vmem:[#allocation5 + $0x348] sm:$0xff]
    %v262 = vld [vmem:[#allocation5 + $0x350] sm:$0xff]
    %v263 = vld [vmem:[#allocation5 + $0x358] sm:$0xff]
    %v264 = vld [vmem:[#allocation5 + $0x360] sm:$0xff]
    %v265 = vld [vmem:[#allocation5 + $0x368] sm:$0xff]
    %v266 = vld [vmem:[#allocation5 + $0x370] sm:$0xff]
    %v267 = vld [vmem:[#allocation5 + $0x378] sm:$0xff]
    %v268 = vld [vmem:[#allocation5 + $0x380] sm:$0xff]
    %v269 = vld [vmem:[#allocation5 + $0x388] sm:$0xff]
    %v270 = vld [vmem:[#allocation5 + $0x390] sm:$0xff]
    %v271 = vld [vmem:[#allocation5 + $0x398] sm:$0xff]
    %v272 = vld [vmem:[#allocation5 + $0x3a0] sm:$0xff]
    %v273 = vld [vmem:[#allocation5 + $0x3a8] sm:$0xff]
    %v274 = vld [vmem:[#allocation5 + $0x3b0] sm:$0xff]
    %v275 = vld [vmem:[#allocation5 + $0x3b8] sm:$0xff]
    %v276 = vld [vmem:[#allocation5 + $0x3c0] sm:$0xff]
    %v277 = vld [vmem:[#allocation5 + $0x3c8] sm:$0xff]
    %v278 = vld [vmem:[#allocation5 + $0x3d0] sm:$0xff]
    %v279 = vld [vmem:[#allocation5 + $0x3d8] sm:$0xff]
    %v280 = vld [vmem:[#allocation5 + $0x3e0] sm:$0xff]
    %v281 = vld [vmem:[#allocation5 + $0x3e8] sm:$0xff]
    %v282 = vld [vmem:[#allocation5 + $0x3f0] sm:$0xff]
    %v283 = vld [vmem:[#allocation5 + $0x3f8] sm:$0xff]
    %v292 = vcombine.low %v43, %v45
    %v293 = vcombine.high %v43, %v45
    %v294 = vcombine.low %v47, %v49
    %v295 = vcombine.high %v47, %v49
    %v297 = vunpack.c.l.s4 1983009808
    %v298 = vunpack.c.0.s8 %v297
    %v299 = vlaneseq
    %v300 = vshrl.u32 %v299, 7
    %v301 = vsub.s32 %v298, %v300
    %v302 = vrot.slane %v292, %v301
    %v304 = vunpack.c.l.s4 1983009808
    %v305 = vunpack.c.0.s8 %v304
    %v306 = vlaneseq
    %v307 = vshrl.u32 %v306, 7
    %v308 = vsub.s32 %v305, %v307
    %v309 = vrot.slane %v293, %v308
    %v311 = vunpack.c.l.s4 1983009808
    %v312 = vunpack.c.0.s8 %v311
    %v313 = vlaneseq
    %v314 = vshrl.u32 %v313, 7
    %v315 = vsub.s32 %v312, %v314
    %v316 = vrot.slane %v294, %v315
    %v318 = vunpack.c.l.s4 1983009808
    %v319 = vunpack.c.0.s8 %v318
    %v320 = vlaneseq
    %v321 = vshrl.u32 %v320, 7
    %v322 = vsub.s32 %v319, %v321
    %v323 = vrot.slane %v295, %v322
    %v324 = vcombine.low %v302, %v316
    %v325 = vcombine.high %v302, %v316
    %v326 = vcombine.low %v309, %v323
    %v327 = vcombine.high %v309, %v323
    %v328 = vcombine.low %v44, %v46
    %v329 = vcombine.high %v44, %v46
    %v330 = vcombine.low %v48, %v50
    %v331 = vcombine.high %v48, %v50
    %v333 = vunpack.c.l.s4 1983009808
    %v334 = vunpack.c.0.s8 %v333
    %v335 = vlaneseq
    %v336 = vshrl.u32 %v335, 7
    %v337 = vsub.s32 %v334, %v336
    %v338 = vrot.slane %v328, %v337
    %v340 = vunpack.c.l.s4 1983009808
    %v341 = vunpack.c.0.s8 %v340
    %v342 = vlaneseq
    %v343 = vshrl.u32 %v342, 7
    %v344 = vsub.s32 %v341, %v343
    %v345 = vrot.slane %v329, %v344
    %v347 = vunpack.c.l.s4 1983009808
    %v348 = vunpack.c.0.s8 %v347
    %v349 = vlaneseq
    %v350 = vshrl.u32 %v349, 7
    %v351 = vsub.s32 %v348, %v350
    %v352 = vrot.slane %v330, %v351
    %v354 = vunpack.c.l.s4 1983009808
    %v355 = vunpack.c.0.s8 %v354
    %v356 = vlaneseq
    %v357 = vshrl.u32 %v356, 7
    %v358 = vsub.s32 %v355, %v357
    %v359 = vrot.slane %v331, %v358
    %v360 = vcombine.low %v338, %v352
    %v361 = vcombine.high %v338, %v352
    %v362 = vcombine.low %v345, %v359
    %v363 = vcombine.high %v345, %v359
    %372 = vmatprep.subr.mxu0 0.0
    %373 = vmatpush1.msra.mxu0 %v156
    %374 = vmatprep.subr.mxu0 0.0
    %375 = vmatpush1.msra.mxu0 %v157
    %376 = vmatprep.subr.mxu0 0.0
    %377 = vmatpush1.msra.mxu0 %v158
    %378 = vmatprep.subr.mxu0 0.0
    %379 = vmatpush1.msra.mxu0 %v159
    %380 = vmatprep.subr.mxu0 0.0
    %381 = vmatpush1.msra.mxu0 %v160
    %382 = vmatprep.subr.mxu0 0.0
    %383 = vmatpush1.msra.mxu0 %v161
    %384 = vmatprep.subr.mxu0 0.0
    %385 = vmatpush1.msra.mxu0 %v162
    %386 = vmatprep.subr.mxu0 0.0
    %387 = vmatpush1.msra.mxu0 %v163
    %388 = vmatprep.subr.mxu0 0.0
    %389 = vmatpush1.msra.mxu0 %v164
    %390 = vmatprep.subr.mxu0 0.0
    %391 = vmatpush1.msra.mxu0 %v165
    %392 = vmatprep.subr.mxu0 0.0
    %393 = vmatpush1.msra.mxu0 %v166
    %394 = vmatprep.subr.mxu0 0.0
    %395 = vmatpush1.msra.mxu0 %v167
    %396 = vmatprep.subr.mxu0 0.0
    %397 = vmatpush1.msra.mxu0 %v168
    %398 = vmatprep.subr.mxu0 0.0
    %399 = vmatpush1.msra.mxu0 %v169
    %400 = vmatprep.subr.mxu0 0.0
    %401 = vmatpush1.msra.mxu0 %v170
    %402 = vmatprep.subr.mxu0 0.0
    %403 = vmatpush1.msra.mxu0 %v171
    %404 = vmatprep.subr.mxu0 0.0
    %405 = vmatpush1.msra.mxu0 %v172
    %406 = vmatprep.subr.mxu0 0.0
    %407 = vmatpush1.msra.mxu0 %v173
    %408 = vmatprep.subr.mxu0 0.0
    %409 = vmatpush1.msra.mxu0 %v174
    %410 = vmatprep.subr.mxu0 0.0
    %411 = vmatpush1.msra.mxu0 %v175
    %412 = vmatprep.subr.mxu0 0.0
    %413 = vmatpush1.msra.mxu0 %v176
    %414 = vmatprep.subr.mxu0 0.0
    %415 = vmatpush1.msra.mxu0 %v177
    %416 = vmatprep.subr.mxu0 0.0
    %417 = vmatpush1.msra.mxu0 %v178
    %418 = vmatprep.subr.mxu0 0.0
    %419 = vmatpush1.msra.mxu0 %v179
    %420 = vmatprep.subr.mxu0 0.0
    %421 = vmatpush1.msra.mxu0 %v180
    %422 = vmatprep.subr.mxu0 0.0
    %423 = vmatpush1.msra.mxu0 %v181
    %424 = vmatprep.subr.mxu0 0.0
    %425 = vmatpush1.msra.mxu0 %v182
    %426 = vmatprep.subr.mxu0 0.0
    %427 = vmatpush1.msra.mxu0 %v183
    %428 = vmatprep.subr.mxu0 0.0
    %429 = vmatpush1.msra.mxu0 %v184
    %430 = vmatprep.subr.mxu0 0.0
    %431 = vmatpush1.msra.mxu0 %v185
    %432 = vmatprep.subr.mxu0 0.0
    %433 = vmatpush1.msra.mxu0 %v186
    %434 = vmatprep.subr.mxu0 0.0
    %435 = vmatpush1.msra.mxu0 %v187
    %436 = vmatprep.mubr.f32.mxu0 %v325
    %437 = vmatmul.mubr.f32.gmra.mrb[0].mxu0 %v324
    %v438 = vpop.f32.mrb[0].mxu0
    %v439 = vadd.f32 0.0, %v438
    %v440 = vpop.f32.mrb[0].mxu0
    %441 = vdwg.mxu0
    %442 = vmatprep.subr.mxu0 0.0
    %443 = vmatpush1.msra.mxu0 %v188
    %444 = vmatprep.subr.mxu0 0.0
    %445 = vmatpush1.msra.mxu0 %v189
    %446 = vmatprep.subr.mxu0 0.0
    %447 = vmatpush1.msra.mxu0 %v190
    %448 = vmatprep.subr.mxu0 0.0
    %449 = vmatpush1.msra.mxu0 %v191
    %450 = vmatprep.subr.mxu0 0.0
    %451 = vmatpush1.msra.mxu0 %v192
    %452 = vmatprep.subr.mxu0 0.0
    %453 = vmatpush1.msra.mxu0 %v193
    %454 = vmatprep.subr.mxu0 0.0
    %455 = vmatpush1.msra.mxu0 %v194
    %456 = vmatprep.subr.mxu0 0.0
    %457 = vmatpush1.msra.mxu0 %v195
    %458 = vmatprep.subr.mxu0 0.0
    %459 = vmatpush1.msra.mxu0 %v196
    %460 = vmatprep.subr.mxu0 0.0
    %461 = vmatpush1.msra.mxu0 %v197
    %462 = vmatprep.subr.mxu0 0.0
    %463 = vmatpush1.msra.mxu0 %v198
    %464 = vmatprep.subr.mxu0 0.0
    %465 = vmatpush1.msra.mxu0 %v199
    %466 = vmatprep.subr.mxu0 0.0
    %467 = vmatpush1.msra.mxu0 %v200
    %468 = vmatprep.subr.mxu0 0.0
    %469 = vmatpush1.msra.mxu0 %v201
    %470 = vmatprep.subr.mxu0 0.0
    %471 = vmatpush1.msra.mxu0 %v202
    %472 = vmatprep.subr.mxu0 0.0
    %473 = vmatpush1.msra.mxu0 %v203
    %474 = vmatprep.subr.mxu0 0.0
    %475 = vmatpush1.msra.mxu0 %v204
    %476 = vmatprep.subr.mxu0 0.0
    %477 = vmatpush1.msra.mxu0 %v205
    %478 = vmatprep.subr.mxu0 0.0
    %479 = vmatpush1.msra.mxu0 %v206
    %480 = vmatprep.subr.mxu0 0.0
    %481 = vmatpush1.msra.mxu0 %v207
    %482 = vmatprep.subr.mxu0 0.0
    %483 = vmatpush1.msra.mxu0 %v208
    %484 = vmatprep.subr.mxu0 0.0
    %485 = vmatpush1.msra.mxu0 %v209
    %486 = vmatprep.subr.mxu0 0.0
    %487 = vmatpush1.msra.mxu0 %v210
    %488 = vmatprep.subr.mxu0 0.0
    %489 = vmatpush1.msra.mxu0 %v211
    %490 = vmatprep.subr.mxu0 0.0
    %491 = vmatpush1.msra.mxu0 %v212
    %492 = vmatprep.subr.mxu0 0.0
    %493 = vmatpush1.msra.mxu0 %v213
    %494 = vmatprep.subr.mxu0 0.0
    %495 = vmatpush1.msra.mxu0 %v214
    %496 = vmatprep.subr.mxu0 0.0
    %497 = vmatpush1.msra.mxu0 %v215
    %498 = vmatprep.subr.mxu0 0.0
    %499 = vmatpush1.msra.mxu0 %v216
    %500 = vmatprep.subr.mxu0 0.0
    %501 = vmatpush1.msra.mxu0 %v217
    %502 = vmatprep.subr.mxu0 0.0
    %503 = vmatpush1.msra.mxu0 %v218
    %504 = vmatprep.subr.mxu0 0.0
    %505 = vmatpush1.msra.mxu0 %v219
    %506 = vmatprep.mubr.f32.mxu0 %v327
    %507 = vmatmul.mubr.f32.gmra.mrb[0].mxu0 %v326
    %v508 = vpop.f32.mrb[0].mxu0
    %v509 = vadd.f32 %v439, %v508
    %v510 = vpop.f32.mrb[0].mxu0
    %511 = vdwg.mxu0
    %512 = vmatprep.subr.mxu0 0.0
    %513 = vmatpush1.msra.mxu0 %v220
    %514 = vmatprep.subr.mxu0 0.0
    %515 = vmatpush1.msra.mxu0 %v221
    %516 = vmatprep.subr.mxu0 0.0
    %517 = vmatpush1.msra.mxu0 %v222
    %518 = vmatprep.subr.mxu0 0.0
    %519 = vmatpush1.msra.mxu0 %v223
    %520 = vmatprep.subr.mxu0 0.0
    %521 = vmatpush1.msra.mxu0 %v224
    %522 = vmatprep.subr.mxu0 0.0
    %523 = vmatpush1.msra.mxu0 %v225
    %524 = vmatprep.subr.mxu0 0.0
    %525 = vmatpush1.msra.mxu0 %v226
    %526 = vmatprep.subr.mxu0 0.0
    %527 = vmatpush1.msra.mxu0 %v227
    %528 = vmatprep.subr.mxu0 0.0
    %529 = vmatpush1.msra.mxu0 %v228
    %530 = vmatprep.subr.mxu0 0.0
    %531 = vmatpush1.msra.mxu0 %v229
    %532 = vmatprep.subr.mxu0 0.0
    %533 = vmatpush1.msra.mxu0 %v230
    %534 = vmatprep.subr.mxu0 0.0
    %535 = vmatpush1.msra.mxu0 %v231
    %536 = vmatprep.subr.mxu0 0.0
    %537 = vmatpush1.msra.mxu0 %v232
    %538 = vmatprep.subr.mxu0 0.0
    %539 = vmatpush1.msra.mxu0 %v233
    %540 = vmatprep.subr.mxu0 0.0
    %541 = vmatpush1.msra.mxu0 %v234
    %542 = vmatprep.subr.mxu0 0.0
    %543 = vmatpush1.msra.mxu0 %v235
    %544 = vmatprep.subr.mxu0 0.0
    %545 = vmatpush1.msra.mxu0 %v236
    %546 = vmatprep.subr.mxu0 0.0
    %547 = vmatpush1.msra.mxu0 %v237
    %548 = vmatprep.subr.mxu0 0.0
    %549 = vmatpush1.msra.mxu0 %v238
    %550 = vmatprep.subr.mxu0 0.0
    %551 = vmatpush1.msra.mxu0 %v239
    %552 = vmatprep.subr.mxu0 0.0
    %553 = vmatpush1.msra.mxu0 %v240
    %554 = vmatprep.subr.mxu0 0.0
    %555 = vmatpush1.msra.mxu0 %v241
    %556 = vmatprep.subr.mxu0 0.0
    %557 = vmatpush1.msra.mxu0 %v242
    %558 = vmatprep.subr.mxu0 0.0
    %559 = vmatpush1.msra.mxu0 %v243
    %560 = vmatprep.subr.mxu0 0.0
    %561 = vmatpush1.msra.mxu0 %v244
    %562 = vmatprep.subr.mxu0 0.0
    %563 = vmatpush1.msra.mxu0 %v245
    %564 = vmatprep.subr.mxu0 0.0
    %565 = vmatpush1.msra.mxu0 %v246
    %566 = vmatprep.subr.mxu0 0.0
    %567 = vmatpush1.msra.mxu0 %v247
    %568 = vmatprep.subr.mxu0 0.0
    %569 = vmatpush1.msra.mxu0 %v248
    %570 = vmatprep.subr.mxu0 0.0
    %571 = vmatpush1.msra.mxu0 %v249
    %572 = vmatprep.subr.mxu0 0.0
    %573 = vmatpush1.msra.mxu0 %v250
    %574 = vmatprep.subr.mxu0 0.0
    %575 = vmatpush1.msra.mxu0 %v251
    %576 = vmatprep.mubr.f32.mxu0 %v361
    %577 = vmatmul.mubr.f32.gmra.mrb[0].mxu0 %v360
    %v578 = vpop.f32.mrb[0].mxu0
    %v579 = vadd.f32 %v509, %v578
    %v580 = vpop.f32.mrb[0].mxu0
    %581 = vdwg.mxu0
    %582 = vmatprep.subr.mxu0 0.0
    %583 = vmatpush1.msra.mxu0 %v252
    %584 = vmatprep.subr.mxu0 0.0
    %585 = vmatpush1.msra.mxu0 %v253
    %586 = vmatprep.subr.mxu0 0.0
    %587 = vmatpush1.msra.mxu0 %v254
    %588 = vmatprep.subr.mxu0 0.0
    %589 = vmatpush1.msra.mxu0 %v255
    %590 = vmatprep.subr.mxu0 0.0
    %591 = vmatpush1.msra.mxu0 %v256
    %592 = vmatprep.subr.mxu0 0.0
    %593 = vmatpush1.msra.mxu0 %v257
    %594 = vmatprep.subr.mxu0 0.0
    %595 = vmatpush1.msra.mxu0 %v258
    %596 = vmatprep.subr.mxu0 0.0
    %597 = vmatpush1.msra.mxu0 %v259
    %598 = vmatprep.subr.mxu0 0.0
    %599 = vmatpush1.msra.mxu0 %v260
    %600 = vmatprep.subr.mxu0 0.0
    %601 = vmatpush1.msra.mxu0 %v261
    %602 = vmatprep.subr.mxu0 0.0
    %603 = vmatpush1.msra.mxu0 %v262
    %604 = vmatprep.subr.mxu0 0.0
    %605 = vmatpush1.msra.mxu0 %v263
    %606 = vmatprep.subr.mxu0 0.0
    %607 = vmatpush1.msra.mxu0 %v264
    %608 = vmatprep.subr.mxu0 0.0
    %609 = vmatpush1.msra.mxu0 %v265
    %610 = vmatprep.subr.mxu0 0.0
    %611 = vmatpush1.msra.mxu0 %v266
    %612 = vmatprep.subr.mxu0 0.0
    %613 = vmatpush1.msra.mxu0 %v267
    %614 = vmatprep.subr.mxu0 0.0
    %615 = vmatpush1.msra.mxu0 %v268
    %616 = vmatprep.subr.mxu0 0.0
    %617 = vmatpush1.msra.mxu0 %v269
    %618 = vmatprep.subr.mxu0 0.0
    %619 = vmatpush1.msra.mxu0 %v270
    %620 = vmatprep.subr.mxu0 0.0
    %621 = vmatpush1.msra.mxu0 %v271
    %622 = vmatprep.subr.mxu0 0.0
    %623 = vmatpush1.msra.mxu0 %v272
    %624 = vmatprep.subr.mxu0 0.0
    %625 = vmatpush1.msra.mxu0 %v273
    %626 = vmatprep.subr.mxu0 0.0
    %627 = vmatpush1.msra.mxu0 %v274
    %628 = vmatprep.subr.mxu0 0.0
    %629 = vmatpush1.msra.mxu0 %v275
    %630 = vmatprep.subr.mxu0 0.0
    %631 = vmatpush1.msra.mxu0 %v276
    %632 = vmatprep.subr.mxu0 0.0
    %633 = vmatpush1.msra.mxu0 %v277
    %634 = vmatprep.subr.mxu0 0.0
    %635 = vmatpush1.msra.mxu0 %v278
    %636 = vmatprep.subr.mxu0 0.0
    %637 = vmatpush1.msra.mxu0 %v279
    %638 = vmatprep.subr.mxu0 0.0
    %639 = vmatpush1.msra.mxu0 %v280
    %640 = vmatprep.subr.mxu0 0.0
    %641 = vmatpush1.msra.mxu0 %v281
    %642 = vmatprep.subr.mxu0 0.0
    %643 = vmatpush1.msra.mxu0 %v282
    %644 = vmatprep.subr.mxu0 0.0
    %645 = vmatpush1.msra.mxu0 %v283
    %646 = vmatprep.mubr.f32.mxu0 %v363
    %647 = vmatmul.mubr.f32.gmra.mrb[0].mxu0 %v362
    %v648 = vpop.f32.mrb[0].mxu0
    %v649 = vadd.f32 %v579, %v648
    %v650 = vpop.f32.mrb[0].mxu0
    %651 = vdwg.mxu0
    %v652 = vld [vmem:[%s2] sm:$0x3]
    %v653 = vlaneseq
    %v654 = vshrl.u32 %v653, 7
    %v655 = vsub.s32 0, %v654
    %v656 = vrot.slane %v652, %v655
    %v657 = vadd.f32 %v155, %v656
    %v658 = vadd.f32 %v657, %v649
    %v659 = vmax.f32 %v658, 0.0
    %v660 = vrsqrt.pop %v659
    %v661 = vmul.f32 %v659, %v660
    %vm662 = vcmp.eq.f32.partialorder %v659, inf
    %v663 = vsel %vm662, %v659, %v661
    %vm664 = vcmp.eq.f32.partialorder %v659, 0.0
    %v665 = vand.u32 %v659, 2147483648
    %v666 = vsel %vm664, %v665, %v663
    %v667 = vsub.f32 0.0, %v666
    %v668 = vlaneseq
    %v669 = vshrl.u32 %v668, 7
    %v670 = vsub.s32 1, %v669
    %v671 = vrot.slane %v652, %v670
    %v672 = vmul.f32 %v667, %v671
    %v673 = vmul.f32 %v672, 1.442695
    %v674 = vpow.pop %v673
    %675 = vst [vmem:[#allocation7] sm:$0xff] %v674
    // Predicated region
    $region22: #{tpu_custom_call.1} parent=1 // pred_check
      _
    $region23: #{tpu_custom_call.1} parent=1 // pred_check_branch
      %677 = sbr.rel (0) target = $region25
    $region24: #{tpu_custom_call.1} parent=1 // pred_region
      %s679 = ssub.s32 128, 32
      %680 = vsyncadd [#allocation4], %s679
      %s681 = sshll.u32 [#allocation7], 4
      %s682 = int_to_ptr.vmem [resolvable:$true] %s681
      %687 = dma.vmem_to_hbm [thread:$0]  %s682, 32, %s3, [#allocation4], 32, 32, 2
    $region25: #{tpu_custom_call.1} parent=1 // pred_fallthru
      _
    // Predicated region
    $region26: #{tpu_custom_call.1} parent=1 // pred_check
      _
    $region27: #{tpu_custom_call.1} parent=1 // pred_check_branch
      %689 = sbr.rel (0) target = $region29
    $region28: #{tpu_custom_call.1} parent=1 // pred_region
      %690 = dma.done [#allocation4], 128
    $region29: #{tpu_custom_call.1} parent=1 // pred_fallthru
      _
    %691 = vsyncpa [#allocation3], 1
    %692 = vsyncpa [#allocation6], 1
    %693 = vsyncpa [#allocation4], 1

// kernel: tpu_custom_call.1
$region0: #{tpu_custom_call.1}
  #allocation0 [shape = 'u32[]', space=smem, size = 0x4, offset = 0x4, fixed_abs, tag = 'smem constant byte address 0x4 - core index']
  #allocation1 [shape = 'u32[144,128]{1,0:T(1,128)}', space=vmem, size = 0x12000, scoped, tag = 'internal scratch']
  %s0 = inlined_call_operand.hbm [shape: f32[2,1024], index: 0, kind: input, shape index: {}]
  %s1 = inlined_call_operand.hbm [shape: f32[1024,128], index: 1, kind: input, shape index: {}]
  %s2 = inlined_call_operand.vmem [shape: f32[2,128], index: 2, kind: input, shape index: {}]
  %s3 = inlined_call_operand.hbm [shape: f32[2,128], index: 3, kind: output, shape index: {}]
  %s4 = sld [smem:[#allocation0]]
  $region30: #{tpu_custom_call.1} parent=0
    _
  %s6 = ssub.s32 1, %s4
  %s7 = scalar_select 0, %s6, %s4
  $region1: #{tpu_custom_call.1} parent=0
    #allocation2 [shape = 'u8[32768]{0}', space=vmem, size = 0x8000, scoped, tag = 'input window, operand 0, single buffered']
    #allocation3 [shape = 's32[1]{0}', space=sflag, size = 0x4, scoped, tag = 'scoped memory for tpu_custom_call.1']
    #allocation4 [shape = 's32[1]{0}', space=sflag, size = 0x4, scoped, tag = 'scoped memory for tpu_custom_call.1']
    #allocation5 [shape = 'u8[524288]{0}', space=vmem, size = 0x80000, scoped, tag = 'input window, operand 1, single buffered']
    #allocation6 [shape = 's32[1]{0}', space=sflag, size = 0x4, scoped, tag = 'scoped memory for tpu_custom_call.1']
    #allocation7 [shape = 'u8[4096]{0}', space=vmem, size = 0x1000, scoped, tag = 'output window, operand 0, single buffered']
    %8 = vsyncpa [#allocation3], 0
    %9 = vsyncpa [#allocation6], 0
    %10 = vsyncpa [#allocation4], 0
    // Predicated region
    $region2: #{tpu_custom_call.1} parent=1 // pred_check
      _
    $region3: #{tpu_custom_call.1} parent=1 // pred_check_branch
      %12 = sbr.rel (0) target = $region5
    $region4: #{tpu_custom_call.1} parent=1 // pred_region
      %s14 = ssub.s32 1024, 256
      %15 = vsyncadd [#allocation3], %s14
      %s16 = sshll.u32 [#allocation2], 4
      %s17 = int_to_ptr.vmem [resolvable:$true] %s16
      %22 = dma.hbm_to_vmem [thread:$0]  %s0, 256, %s17, [#allocation3], 256, 256, 16
    $region5: #{tpu_custom_call.1} parent=1 // pred_fallthru
      _
    // Predicated region
    $region6: #{tpu_custom_call.1} parent=1 // pred_check
      _
    $region7: #{tpu_custom_call.1} parent=1 // pred_check_branch
      %24 = sbr.rel (0) target = $region9
    $region8: #{tpu_custom_call.1} parent=1 // pred_region
      %s26 = ssub.s32 16384, 16384
      %27 = vsyncadd [#allocation6], %s26
      %s28 = sshll.u32 [#allocation5], 4
      %s29 = int_to_ptr.vmem [resolvable:$true] %s28
      %34 = dma.hbm_to_vmem [thread:$0]  %s1, 16384, %s29, [#allocation6], 128, 128, 8
    $region9: #{tpu_custom_call.1} parent=1 // pred_fallthru
      _
    // Predicated region
    $region10: #{tpu_custom_call.1} parent=1 // pred_check
      _
    $region11: #{tpu_custom_call.1} parent=1 // pred_check_branch
      %36 = sbr.rel (0) target = $region13
    $region12: #{tpu_custom_call.1} parent=1 // pred_region
      _
    $region13: #{tpu_custom_call.1} parent=1 // pred_fallthru
      _
    // Predicated region
    $region14: #{tpu_custom_call.1} parent=1 // pred_check
      _
    $region15: #{tpu_custom_call.1} parent=1 // pred_check_branch
      %38 = sbr.rel (0) target = $region17
    $region16: #{tpu_custom_call.1} parent=1 // pred_region
      %39 = dma.done [#allocation3], 1024
    $region17: #{tpu_custom_call.1} parent=1 // pred_fallthru
      _
    // Predicated region
    $region18: #{tpu_custom_call.1} parent=1 // pred_check
      _
    $region19: #{tpu_custom_call.1} parent=1 // pred_check_branch
      %41 = sbr.rel (0) target = $region21
    $region20: #{tpu_custom_call.1} parent=1 // pred_region
      %42 = dma.done [#allocation6], 16384
    $region21: #{tpu_custom_call.1} parent=1 // pred_fallthru
      _
    %v43 = vld [vmem:[#allocation2] sm:$0xff]
    %v44 = vld [vmem:[#allocation2 + $0x8] sm:$0xff]
    %v45 = vld [vmem:[#allocation2 + $0x10] sm:$0xff]
    %v46 = vld [vmem:[#allocation2 + $0x18] sm:$0xff]
    %v47 = vld [vmem:[#allocation2 + $0x20] sm:$0xff]
    %v48 = vld [vmem:[#allocation2 + $0x28] sm:$0xff]
    %v49 = vld [vmem:[#allocation2 + $0x30] sm:$0xff]
    %v50 = vld [vmem:[#allocation2 + $0x38] sm:$0xff]
    %v51 = vmul.f32 %v43, %v43
    %v52 = vmul.f32 %v44, %v44
    %v53 = vmul.f32 %v45, %v45
    %v54 = vmul.f32 %v46, %v46
    %v55 = vmul.f32 %v47, %v47
    %v56 = vmul.f32 %v48, %v48
    %v57 = vmul.f32 %v49, %v49
    %v58 = vmul.f32 %v50, %v50
    %v67 = vcombine.low %v51, %v53
    %v68 = vcombine.high %v51, %v53
    %v69 = vcombine.low %v55, %v57
    %v70 = vcombine.high %v55, %v57
    %v72 = vunpack.c.l.s4 1983009808
    %v73 = vunpack.c.0.s8 %v72
    %v74 = vlaneseq
    %v75 = vshrl.u32 %v74, 7
    %v76 = vsub.s32 %v73, %v75
    %v77 = vrot.slane %v67, %v76
    %v79 = vunpack.c.l.s4 1983009808
    %v80 = vunpack.c.0.s8 %v79
    %v81 = vlaneseq
    %v82 = vshrl.u32 %v81, 7
    %v83 = vsub.s32 %v80, %v82
    %v84 = vrot.slane %v68, %v83
    %v86 = vunpack.c.l.s4 1983009808
    %v87 = vunpack.c.0.s8 %v86
    %v88 = vlaneseq
    %v89 = vshrl.u32 %v88, 7
    %v90 = vsub.s32 %v87, %v89
    %v91 = vrot.slane %v69, %v90
    %v93 = vunpack.c.l.s4 1983009808
    %v94 = vunpack.c.0.s8 %v93
    %v95 = vlaneseq
    %v96 = vshrl.u32 %v95, 7
    %v97 = vsub.s32 %v94, %v96
    %v98 = vrot.slane %v70, %v97
    %v99 = vcombine.low %v77, %v91
    %v100 = vcombine.high %v77, %v91
    %v101 = vcombine.low %v84, %v98
    %v102 = vcombine.high %v84, %v98
    %v103 = vcombine.low %v52, %v54
    %v104 = vcombine.high %v52, %v54
    %v105 = vcombine.low %v56, %v58
    %v106 = vcombine.high %v56, %v58
    %v108 = vunpack.c.l.s4 1983009808
    %v109 = vunpack.c.0.s8 %v108
    %v110 = vlaneseq
    %v111 = vshrl.u32 %v110, 7
    %v112 = vsub.s32 %v109, %v111
    %v113 = vrot.slane %v103, %v112
    %v115 = vunpack.c.l.s4 1983009808
    %v116 = vunpack.c.0.s8 %v115
    %v117 = vlaneseq
    %v118 = vshrl.u32 %v117, 7
    %v119 = vsub.s32 %v116, %v118
    %v120 = vrot.slane %v104, %v119
    %v122 = vunpack.c.l.s4 1983009808
    %v123 = vunpack.c.0.s8 %v122
    %v124 = vlaneseq
    %v125 = vshrl.u32 %v124, 7
    %v126 = vsub.s32 %v123, %v125
    %v127 = vrot.slane %v105, %v126
    %v129 = vunpack.c.l.s4 1983009808
    %v130 = vunpack.c.0.s8 %v129
    %v131 = vlaneseq
    %v132 = vshrl.u32 %v131, 7
    %v133 = vsub.s32 %v130, %v132
    %v134 = vrot.slane %v106, %v133
    %v135 = vcombine.low %v113, %v127
    %v136 = vcombine.high %v113, %v127
    %v137 = vcombine.low %v120, %v134
    %v138 = vcombine.high %v120, %v134
    %v147 = vadd.f32 %v99, %v100
    %v148 = vadd.f32 %v147, %v101
    %v149 = vadd.f32 %v148, %v102
    %v150 = vadd.f32 %v149, %v135
    %v151 = vadd.f32 %v150, %v136
    %v152 = vadd.f32 %v151, %v137
    %v153 = vadd.f32 %v152, %v138
    %154 = vadd.xlane.f32.xlu0 %v153
    %v155 = vpop.xlane.xlu0 %154
    %v156 = vld [vmem:[#allocation5] sm:$0xff]
    %v157 = vld [vmem:[#allocation5 + $0x8] sm:$0xff]
    %v158 = vld [vmem:[#allocation5 + $0x10] sm:$0xff]
    %v159 = vld [vmem:[#allocation5 + $0x18] sm:$0xff]
    %v160 = vld [vmem:[#allocation5 + $0x20] sm:$0xff]
    %v161 = vld [vmem:[#allocation5 + $0x28] sm:$0xff]
    %v162 = vld [vmem:[#allocation5 + $0x30] sm:$0xff]
    %v163 = vld [vmem:[#allocation5 + $0x38] sm:$0xff]
    %v164 = vld [vmem:[#allocation5 + $0x40] sm:$0xff]
    %v165 = vld [vmem:[#allocation5 + $0x48] sm:$0xff]
    %v166 = vld [vmem:[#allocation5 + $0x50] sm:$0xff]
    %v167 = vld [vmem:[#allocation5 + $0x58] sm:$0xff]
    %v168 = vld [vmem:[#allocation5 + $0x60] sm:$0xff]
    %v169 = vld [vmem:[#allocation5 + $0x68] sm:$0xff]
    %v170 = vld [vmem:[#allocation5 + $0x70] sm:$0xff]
    %v171 = vld [vmem:[#allocation5 + $0x78] sm:$0xff]
    %v172 = vld [vmem:[#allocation5 + $0x80] sm:$0xff]
    %v173 = vld [vmem:[#allocation5 + $0x88] sm:$0xff]
    %v174 = vld [vmem:[#allocation5 + $0x90] sm:$0xff]
    %v175 = vld [vmem:[#allocation5 + $0x98] sm:$0xff]
    %v176 = vld [vmem:[#allocation5 + $0xa0] sm:$0xff]
    %v177 = vld [vmem:[#allocation5 + $0xa8] sm:$0xff]
    %v178 = vld [vmem:[#allocation5 + $0xb0] sm:$0xff]
    %v179 = vld [vmem:[#allocation5 + $0xb8] sm:$0xff]
    %v180 = vld [vmem:[#allocation5 + $0xc0] sm:$0xff]
    %v181 = vld [vmem:[#allocation5 + $0xc8] sm:$0xff]
    %v182 = vld [vmem:[#allocation5 + $0xd0] sm:$0xff]
    %v183 = vld [vmem:[#allocation5 + $0xd8] sm:$0xff]
    %v184 = vld [vmem:[#allocation5 + $0xe0] sm:$0xff]
    %v185 = vld [vmem:[#allocation5 + $0xe8] sm:$0xff]
    %v186 = vld [vmem:[#allocation5 + $0xf0] sm:$0xff]
    %v187 = vld [vmem:[#allocation5 + $0xf8] sm:$0xff]
    %v188 = vld [vmem:[#allocation5 + $0x100] sm:$0xff]
    %v189 = vld [vmem:[#allocation5 + $0x108] sm:$0xff]
    %v190 = vld [vmem:[#allocation5 + $0x110] sm:$0xff]
    %v191 = vld [vmem:[#allocation5 + $0x118] sm:$0xff]
    %v192 = vld [vmem:[#allocation5 + $0x120] sm:$0xff]
    %v193 = vld [vmem:[#allocation5 + $0x128] sm:$0xff]
    %v194 = vld [vmem:[#allocation5 + $0x130] sm:$0xff]
    %v195 = vld [vmem:[#allocation5 + $0x138] sm:$0xff]
    %v196 = vld [vmem:[#allocation5 + $0x140] sm:$0xff]
    %v197 = vld [vmem:[#allocation5 + $0x148] sm:$0xff]
    %v198 = vld [vmem:[#allocation5 + $0x150] sm:$0xff]
    %v199 = vld [vmem:[#allocation5 + $0x158] sm:$0xff]
    %v200 = vld [vmem:[#allocation5 + $0x160] sm:$0xff]
    %v201 = vld [vmem:[#allocation5 + $0x168] sm:$0xff]
    %v202 = vld [vmem:[#allocation5 + $0x170] sm:$0xff]
    %v203 = vld [vmem:[#allocation5 + $0x178] sm:$0xff]
    %v204 = vld [vmem:[#allocation5 + $0x180] sm:$0xff]
    %v205 = vld [vmem:[#allocation5 + $0x188] sm:$0xff]
    %v206 = vld [vmem:[#allocation5 + $0x190] sm:$0xff]
    %v207 = vld [vmem:[#allocation5 + $0x198] sm:$0xff]
    %v208 = vld [vmem:[#allocation5 + $0x1a0] sm:$0xff]
    %v209 = vld [vmem:[#allocation5 + $0x1a8] sm:$0xff]
    %v210 = vld [vmem:[#allocation5 + $0x1b0] sm:$0xff]
    %v211 = vld [vmem:[#allocation5 + $0x1b8] sm:$0xff]
    %v212 = vld [vmem:[#allocation5 + $0x1c0] sm:$0xff]
    %v213 = vld [vmem:[#allocation5 + $0x1c8] sm:$0xff]
    %v214 = vld [vmem:[#allocation5 + $0x1d0] sm:$0xff]
    %v215 = vld [vmem:[#allocation5 + $0x1d8] sm:$0xff]
    %v216 = vld [vmem:[#allocation5 + $0x1e0] sm:$0xff]
    %v217 = vld [vmem:[#allocation5 + $0x1e8] sm:$0xff]
    %v218 = vld [vmem:[#allocation5 + $0x1f0] sm:$0xff]
    %v219 = vld [vmem:[#allocation5 + $0x1f8] sm:$0xff]
    %v220 = vld [vmem:[#allocation5 + $0x200] sm:$0xff]
    %v221 = vld [vmem:[#allocation5 + $0x208] sm:$0xff]
    %v222 = vld [vmem:[#allocation5 + $0x210] sm:$0xff]
    %v223 = vld [vmem:[#allocation5 + $0x218] sm:$0xff]
    %v224 = vld [vmem:[#allocation5 + $0x220] sm:$0xff]
    %v225 = vld [vmem:[#allocation5 + $0x228] sm:$0xff]
    %v226 = vld [vmem:[#allocation5 + $0x230] sm:$0xff]
    %v227 = vld [vmem:[#allocation5 + $0x238] sm:$0xff]
    %v228 = vld [vmem:[#allocation5 + $0x240] sm:$0xff]
    %v229 = vld [vmem:[#allocation5 + $0x248] sm:$0xff]
    %v230 = vld [vmem:[#allocation5 + $0x250] sm:$0xff]
    %v231 = vld [vmem:[#allocation5 + $0x258] sm:$0xff]
    %v232 = vld [vmem:[#allocation5 + $0x260] sm:$0xff]
    %v233 = vld [vmem:[#allocation5 + $0x268] sm:$0xff]
    %v234 = vld [vmem:[#allocation5 + $0x270] sm:$0xff]
    %v235 = vld [vmem:[#allocation5 + $0x278] sm:$0xff]
    %v236 = vld [vmem:[#allocation5 + $0x280] sm:$0xff]
    %v237 = vld [vmem:[#allocation5 + $0x288] sm:$0xff]
    %v238 = vld [vmem:[#allocation5 + $0x290] sm:$0xff]
    %v239 = vld [vmem:[#allocation5 + $0x298] sm:$0xff]
    %v240 = vld [vmem:[#allocation5 + $0x2a0] sm:$0xff]
    %v241 = vld [vmem:[#allocation5 + $0x2a8] sm:$0xff]
    %v242 = vld [vmem:[#allocation5 + $0x2b0] sm:$0xff]
    %v243 = vld [vmem:[#allocation5 + $0x2b8] sm:$0xff]
    %v244 = vld [vmem:[#allocation5 + $0x2c0] sm:$0xff]
    %v245 = vld [vmem:[#allocation5 + $0x2c8] sm:$0xff]
    %v246 = vld [vmem:[#allocation5 + $0x2d0] sm:$0xff]
    %v247 = vld [vmem:[#allocation5 + $0x2d8] sm:$0xff]
    %v248 = vld [vmem:[#allocation5 + $0x2e0] sm:$0xff]
    %v249 = vld [vmem:[#allocation5 + $0x2e8] sm:$0xff]
    %v250 = vld [vmem:[#allocation5 + $0x2f0] sm:$0xff]
    %v251 = vld [vmem:[#allocation5 + $0x2f8] sm:$0xff]
    %v252 = vld [vmem:[#allocation5 + $0x300] sm:$0xff]
    %v253 = vld [vmem:[#allocation5 + $0x308] sm:$0xff]
    %v254 = vld [vmem:[#allocation5 + $0x310] sm:$0xff]
    %v255 = vld [vmem:[#allocation5 + $0x318] sm:$0xff]
    %v256 = vld [vmem:[#allocation5 + $0x320] sm:$0xff]
    %v257 = vld [vmem:[#allocation5 + $0x328] sm:$0xff]
    %v258 = vld [vmem:[#allocation5 + $0x330] sm:$0xff]
    %v259 = vld [vmem:[#allocation5 + $0x338] sm:$0xff]
    %v260 = vld [vmem:[#allocation5 + $0x340] sm:$0xff]
    %v261 = vld [vmem:[#allocation5 + $0x348] sm:$0xff]
    %v262 = vld [vmem:[#allocation5 + $0x350] sm:$0xff]
    %v263 = vld [vmem:[#allocation5 + $0x358] sm:$0xff]
    %v264 = vld [vmem:[#allocation5 + $0x360] sm:$0xff]
    %v265 = vld [vmem:[#allocation5 + $0x368] sm:$0xff]
    %v266 = vld [vmem:[#allocation5 + $0x370] sm:$0xff]
    %v267 = vld [vmem:[#allocation5 + $0x378] sm:$0xff]
    %v268 = vld [vmem:[#allocation5 + $0x380] sm:$0xff]
    %v269 = vld [vmem:[#allocation5 + $0x388] sm:$0xff]
    %v270 = vld [vmem:[#allocation5 + $0x390] sm:$0xff]
    %v271 = vld [vmem:[#allocation5 + $0x398] sm:$0xff]
    %v272 = vld [vmem:[#allocation5 + $0x3a0] sm:$0xff]
    %v273 = vld [vmem:[#allocation5 + $0x3a8] sm:$0xff]
    %v274 = vld [vmem:[#allocation5 + $0x3b0] sm:$0xff]
    %v275 = vld [vmem:[#allocation5 + $0x3b8] sm:$0xff]
    %v276 = vld [vmem:[#allocation5 + $0x3c0] sm:$0xff]
    %v277 = vld [vmem:[#allocation5 + $0x3c8] sm:$0xff]
    %v278 = vld [vmem:[#allocation5 + $0x3d0] sm:$0xff]
    %v279 = vld [vmem:[#allocation5 + $0x3d8] sm:$0xff]
    %v280 = vld [vmem:[#allocation5 + $0x3e0] sm:$0xff]
    %v281 = vld [vmem:[#allocation5 + $0x3e8] sm:$0xff]
    %v282 = vld [vmem:[#allocation5 + $0x3f0] sm:$0xff]
    %v283 = vld [vmem:[#allocation5 + $0x3f8] sm:$0xff]
    %v292 = vcombine.low %v43, %v45
    %v293 = vcombine.high %v43, %v45
    %v294 = vcombine.low %v47, %v49
    %v295 = vcombine.high %v47, %v49
    %v297 = vunpack.c.l.s4 1983009808
    %v298 = vunpack.c.0.s8 %v297
    %v299 = vlaneseq
    %v300 = vshrl.u32 %v299, 7
    %v301 = vsub.s32 %v298, %v300
    %v302 = vrot.slane %v292, %v301
    %v304 = vunpack.c.l.s4 1983009808
    %v305 = vunpack.c.0.s8 %v304
    %v306 = vlaneseq
    %v307 = vshrl.u32 %v306, 7
    %v308 = vsub.s32 %v305, %v307
    %v309 = vrot.slane %v293, %v308
    %v311 = vunpack.c.l.s4 1983009808
    %v312 = vunpack.c.0.s8 %v311
    %v313 = vlaneseq
    %v314 = vshrl.u32 %v313, 7
    %v315 = vsub.s32 %v312, %v314
    %v316 = vrot.slane %v294, %v315
    %v318 = vunpack.c.l.s4 1983009808
    %v319 = vunpack.c.0.s8 %v318
    %v320 = vlaneseq
    %v321 = vshrl.u32 %v320, 7
    %v322 = vsub.s32 %v319, %v321
    %v323 = vrot.slane %v295, %v322
    %v324 = vcombine.low %v302, %v316
    %v325 = vcombine.high %v302, %v316
    %v326 = vcombine.low %v309, %v323
    %v327 = vcombine.high %v309, %v323
    %v328 = vcombine.low %v44, %v46
    %v329 = vcombine.high %v44, %v46
    %v330 = vcombine.low %v48, %v50
    %v331 = vcombine.high %v48, %v50
    %v333 = vunpack.c.l.s4 1983009808
    %v334 = vunpack.c.0.s8 %v333
    %v335 = vlaneseq
    %v336 = vshrl.u32 %v335, 7
    %v337 = vsub.s32 %v334, %v336
    %v338 = vrot.slane %v328, %v337
    %v340 = vunpack.c.l.s4 1983009808
    %v341 = vunpack.c.0.s8 %v340
    %v342 = vlaneseq
    %v343 = vshrl.u32 %v342, 7
    %v344 = vsub.s32 %v341, %v343
    %v345 = vrot.slane %v329, %v344
    %v347 = vunpack.c.l.s4 1983009808
    %v348 = vunpack.c.0.s8 %v347
    %v349 = vlaneseq
    %v350 = vshrl.u32 %v349, 7
    %v351 = vsub.s32 %v348, %v350
    %v352 = vrot.slane %v330, %v351
    %v354 = vunpack.c.l.s4 1983009808
    %v355 = vunpack.c.0.s8 %v354
    %v356 = vlaneseq
    %v357 = vshrl.u32 %v356, 7
    %v358 = vsub.s32 %v355, %v357
    %v359 = vrot.slane %v331, %v358
    %v360 = vcombine.low %v338, %v352
    %v361 = vcombine.high %v338, %v352
    %v362 = vcombine.low %v345, %v359
    %v363 = vcombine.high %v345, %v359
    %372 = vmatprep.subr.mxu0 0.0
    %373 = vmatpush1.msra.mxu0 %v156
    %374 = vmatprep.subr.mxu0 0.0
    %375 = vmatpush1.msra.mxu0 %v157
    %376 = vmatprep.subr.mxu0 0.0
    %377 = vmatpush1.msra.mxu0 %v158
    %378 = vmatprep.subr.mxu0 0.0
    %379 = vmatpush1.msra.mxu0 %v159
    %380 = vmatprep.subr.mxu0 0.0
    %381 = vmatpush1.msra.mxu0 %v160
    %382 = vmatprep.subr.mxu0 0.0
    %383 = vmatpush1.msra.mxu0 %v161
    %384 = vmatprep.subr.mxu0 0.0
    %385 = vmatpush1.msra.mxu0 %v162
    %386 = vmatprep.subr.mxu0 0.0
    %387 = vmatpush1.msra.mxu0 %v163
    %388 = vmatprep.subr.mxu0 0.0
    %389 = vmatpush1.msra.mxu0 %v164
    %390 = vmatprep.subr.mxu0 0.0
    %391 = vmatpush1.msra.mxu0 %v165
    %392 = vmatprep.subr.mxu0 0.0
    %393 = vmatpush1.msra.mxu0 %v166
    %394 = vmatprep.subr.mxu0 0.0
    %395 = vmatpush1.msra.mxu0 %v167
    %396 = vmatprep.subr.mxu0 0.0
    %397 = vmatpush1.msra.mxu0 %v168
    %398 = vmatprep.subr.mxu0 0.0
    %399 = vmatpush1.msra.mxu0 %v169
    %400 = vmatprep.subr.mxu0 0.0
    %401 = vmatpush1.msra.mxu0 %v170
    %402 = vmatprep.subr.mxu0 0.0
    %403 = vmatpush1.msra.mxu0 %v171
    %404 = vmatprep.subr.mxu0 0.0
    %405 = vmatpush1.msra.mxu0 %v172
    %406 = vmatprep.subr.mxu0 0.0
    %407 = vmatpush1.msra.mxu0 %v173
    %408 = vmatprep.subr.mxu0 0.0
    %409 = vmatpush1.msra.mxu0 %v174
    %410 = vmatprep.subr.mxu0 0.0
    %411 = vmatpush1.msra.mxu0 %v175
    %412 = vmatprep.subr.mxu0 0.0
    %413 = vmatpush1.msra.mxu0 %v176
    %414 = vmatprep.subr.mxu0 0.0
    %415 = vmatpush1.msra.mxu0 %v177
    %416 = vmatprep.subr.mxu0 0.0
    %417 = vmatpush1.msra.mxu0 %v178
    %418 = vmatprep.subr.mxu0 0.0
    %419 = vmatpush1.msra.mxu0 %v179
    %420 = vmatprep.subr.mxu0 0.0
    %421 = vmatpush1.msra.mxu0 %v180
    %422 = vmatprep.subr.mxu0 0.0
    %423 = vmatpush1.msra.mxu0 %v181
    %424 = vmatprep.subr.mxu0 0.0
    %425 = vmatpush1.msra.mxu0 %v182
    %426 = vmatprep.subr.mxu0 0.0
    %427 = vmatpush1.msra.mxu0 %v183
    %428 = vmatprep.subr.mxu0 0.0
    %429 = vmatpush1.msra.mxu0 %v184
    %430 = vmatprep.subr.mxu0 0.0
    %431 = vmatpush1.msra.mxu0 %v185
    %432 = vmatprep.subr.mxu0 0.0
    %433 = vmatpush1.msra.mxu0 %v186
    %434 = vmatprep.subr.mxu0 0.0
    %435 = vmatpush1.msra.mxu0 %v187
    %436 = vmatprep.mubr.f32.mxu0 %v325
    %437 = vmatmul.mubr.f32.gmra.mrb[0].mxu0 %v324
    %v438 = vpop.f32.mrb[0].mxu0
    %v439 = vadd.f32 0.0, %v438
    %v440 = vpop.f32.mrb[0].mxu0
    %441 = vdwg.mxu0
    %442 = vmatprep.subr.mxu0 0.0
    %443 = vmatpush1.msra.mxu0 %v188
    %444 = vmatprep.subr.mxu0 0.0
    %445 = vmatpush1.msra.mxu0 %v189
    %446 = vmatprep.subr.mxu0 0.0
    %447 = vmatpush1.msra.mxu0 %v190
    %448 = vmatprep.subr.mxu0 0.0
    %449 = vmatpush1.msra.mxu0 %v191
    %450 = vmatprep.subr.mxu0 0.0
    %451 = vmatpush1.msra.mxu0 %v192
    %452 = vmatprep.subr.mxu0 0.0
    %453 = vmatpush1.msra.mxu0 %v193
    %454 = vmatprep.subr.mxu0 0.0
    %455 = vmatpush1.msra.mxu0 %v194
    %456 = vmatprep.subr.mxu0 0.0
    %457 = vmatpush1.msra.mxu0 %v195
    %458 = vmatprep.subr.mxu0 0.0
    %459 = vmatpush1.msra.mxu0 %v196
    %460 = vmatprep.subr.mxu0 0.0
    %461 = vmatpush1.msra.mxu0 %v197
    %462 = vmatprep.subr.mxu0 0.0
    %463 = vmatpush1.msra.mxu0 %v198
    %464 = vmatprep.subr.mxu0 0.0
    %465 = vmatpush1.msra.mxu0 %v199
    %466 = vmatprep.subr.mxu0 0.0
    %467 = vmatpush1.msra.mxu0 %v200
    %468 = vmatprep.subr.mxu0 0.0
    %469 = vmatpush1.msra.mxu0 %v201
    %470 = vmatprep.subr.mxu0 0.0
    %471 = vmatpush1.msra.mxu0 %v202
    %472 = vmatprep.subr.mxu0 0.0
    %473 = vmatpush1.msra.mxu0 %v203
    %474 = vmatprep.subr.mxu0 0.0
    %475 = vmatpush1.msra.mxu0 %v204
    %476 = vmatprep.subr.mxu0 0.0
    %477 = vmatpush1.msra.mxu0 %v205
    %478 = vmatprep.subr.mxu0 0.0
    %479 = vmatpush1.msra.mxu0 %v206
    %480 = vmatprep.subr.mxu0 0.0
    %481 = vmatpush1.msra.mxu0 %v207
    %482 = vmatprep.subr.mxu0 0.0
    %483 = vmatpush1.msra.mxu0 %v208
    %484 = vmatprep.subr.mxu0 0.0
    %485 = vmatpush1.msra.mxu0 %v209
    %486 = vmatprep.subr.mxu0 0.0
    %487 = vmatpush1.msra.mxu0 %v210
    %488 = vmatprep.subr.mxu0 0.0
    %489 = vmatpush1.msra.mxu0 %v211
    %490 = vmatprep.subr.mxu0 0.0
    %491 = vmatpush1.msra.mxu0 %v212
    %492 = vmatprep.subr.mxu0 0.0
    %493 = vmatpush1.msra.mxu0 %v213
    %494 = vmatprep.subr.mxu0 0.0
    %495 = vmatpush1.msra.mxu0 %v214
    %496 = vmatprep.subr.mxu0 0.0
    %497 = vmatpush1.msra.mxu0 %v215
    %498 = vmatprep.subr.mxu0 0.0
    %499 = vmatpush1.msra.mxu0 %v216
    %500 = vmatprep.subr.mxu0 0.0
    %501 = vmatpush1.msra.mxu0 %v217
    %502 = vmatprep.subr.mxu0 0.0
    %503 = vmatpush1.msra.mxu0 %v218
    %504 = vmatprep.subr.mxu0 0.0
    %505 = vmatpush1.msra.mxu0 %v219
    %506 = vmatprep.mubr.f32.mxu0 %v327
    %507 = vmatmul.mubr.f32.gmra.mrb[0].mxu0 %v326
    %v508 = vpop.f32.mrb[0].mxu0
    %v509 = vadd.f32 %v439, %v508
    %v510 = vpop.f32.mrb[0].mxu0
    %511 = vdwg.mxu0
    %512 = vmatprep.subr.mxu0 0.0
    %513 = vmatpush1.msra.mxu0 %v220
    %514 = vmatprep.subr.mxu0 0.0
    %515 = vmatpush1.msra.mxu0 %v221
    %516 = vmatprep.subr.mxu0 0.0
    %517 = vmatpush1.msra.mxu0 %v222
    %518 = vmatprep.subr.mxu0 0.0
    %519 = vmatpush1.msra.mxu0 %v223
    %520 = vmatprep.subr.mxu0 0.0
    %521 = vmatpush1.msra.mxu0 %v224
    %522 = vmatprep.subr.mxu0 0.0
    %523 = vmatpush1.msra.mxu0 %v225
    %524 = vmatprep.subr.mxu0 0.0
    %525 = vmatpush1.msra.mxu0 %v226
    %526 = vmatprep.subr.mxu0 0.0
    %527 = vmatpush1.msra.mxu0 %v227
    %528 = vmatprep.subr.mxu0 0.0
    %529 = vmatpush1.msra.mxu0 %v228
    %530 = vmatprep.subr.mxu0 0.0
    %531 = vmatpush1.msra.mxu0 %v229
    %532 = vmatprep.subr.mxu0 0.0
    %533 = vmatpush1.msra.mxu0 %v230
    %534 = vmatprep.subr.mxu0 0.0
    %535 = vmatpush1.msra.mxu0 %v231
    %536 = vmatprep.subr.mxu0 0.0
    %537 = vmatpush1.msra.mxu0 %v232
    %538 = vmatprep.subr.mxu0 0.0
    %539 = vmatpush1.msra.mxu0 %v233
    %540 = vmatprep.subr.mxu0 0.0
    %541 = vmatpush1.msra.mxu0 %v234
    %542 = vmatprep.subr.mxu0 0.0
    %543 = vmatpush1.msra.mxu0 %v235
    %544 = vmatprep.subr.mxu0 0.0
    %545 = vmatpush1.msra.mxu0 %v236
    %546 = vmatprep.subr.mxu0 0.0
    %547 = vmatpush1.msra.mxu0 %v237
    %548 = vmatprep.subr.mxu0 0.0
    %549 = vmatpush1.msra.mxu0 %v238
    %550 = vmatprep.subr.mxu0 0.0
    %551 = vmatpush1.msra.mxu0 %v239
    %552 = vmatprep.subr.mxu0 0.0
    %553 = vmatpush1.msra.mxu0 %v240
    %554 = vmatprep.subr.mxu0 0.0
    %555 = vmatpush1.msra.mxu0 %v241
    %556 = vmatprep.subr.mxu0 0.0
    %557 = vmatpush1.msra.mxu0 %v242
    %558 = vmatprep.subr.mxu0 0.0
    %559 = vmatpush1.msra.mxu0 %v243
    %560 = vmatprep.subr.mxu0 0.0
    %561 = vmatpush1.msra.mxu0 %v244
    %562 = vmatprep.subr.mxu0 0.0
    %563 = vmatpush1.msra.mxu0 %v245
    %564 = vmatprep.subr.mxu0 0.0
    %565 = vmatpush1.msra.mxu0 %v246
    %566 = vmatprep.subr.mxu0 0.0
    %567 = vmatpush1.msra.mxu0 %v247
    %568 = vmatprep.subr.mxu0 0.0
    %569 = vmatpush1.msra.mxu0 %v248
    %570 = vmatprep.subr.mxu0 0.0
    %571 = vmatpush1.msra.mxu0 %v249
    %572 = vmatprep.subr.mxu0 0.0
    %573 = vmatpush1.msra.mxu0 %v250
    %574 = vmatprep.subr.mxu0 0.0
    %575 = vmatpush1.msra.mxu0 %v251
    %576 = vmatprep.mubr.f32.mxu0 %v361
    %577 = vmatmul.mubr.f32.gmra.mrb[0].mxu0 %v360
    %v578 = vpop.f32.mrb[0].mxu0
    %v579 = vadd.f32 %v509, %v578
    %v580 = vpop.f32.mrb[0].mxu0
    %581 = vdwg.mxu0
    %582 = vmatprep.subr.mxu0 0.0
    %583 = vmatpush1.msra.mxu0 %v252
    %584 = vmatprep.subr.mxu0 0.0
    %585 = vmatpush1.msra.mxu0 %v253
    %586 = vmatprep.subr.mxu0 0.0
    %587 = vmatpush1.msra.mxu0 %v254
    %588 = vmatprep.subr.mxu0 0.0
    %589 = vmatpush1.msra.mxu0 %v255
    %590 = vmatprep.subr.mxu0 0.0
    %591 = vmatpush1.msra.mxu0 %v256
    %592 = vmatprep.subr.mxu0 0.0
    %593 = vmatpush1.msra.mxu0 %v257
    %594 = vmatprep.subr.mxu0 0.0
    %595 = vmatpush1.msra.mxu0 %v258
    %596 = vmatprep.subr.mxu0 0.0
    %597 = vmatpush1.msra.mxu0 %v259
    %598 = vmatprep.subr.mxu0 0.0
    %599 = vmatpush1.msra.mxu0 %v260
    %600 = vmatprep.subr.mxu0 0.0
    %601 = vmatpush1.msra.mxu0 %v261
    %602 = vmatprep.subr.mxu0 0.0
    %603 = vmatpush1.msra.mxu0 %v262
    %604 = vmatprep.subr.mxu0 0.0
    %605 = vmatpush1.msra.mxu0 %v263
    %606 = vmatprep.subr.mxu0 0.0
    %607 = vmatpush1.msra.mxu0 %v264
    %608 = vmatprep.subr.mxu0 0.0
    %609 = vmatpush1.msra.mxu0 %v265
    %610 = vmatprep.subr.mxu0 0.0
    %611 = vmatpush1.msra.mxu0 %v266
    %612 = vmatprep.subr.mxu0 0.0
    %613 = vmatpush1.msra.mxu0 %v267
    %614 = vmatprep.subr.mxu0 0.0
    %615 = vmatpush1.msra.mxu0 %v268
    %616 = vmatprep.subr.mxu0 0.0
    %617 = vmatpush1.msra.mxu0 %v269
    %618 = vmatprep.subr.mxu0 0.0
    %619 = vmatpush1.msra.mxu0 %v270
    %620 = vmatprep.subr.mxu0 0.0
    %621 = vmatpush1.msra.mxu0 %v271
    %622 = vmatprep.subr.mxu0 0.0
    %623 = vmatpush1.msra.mxu0 %v272
    %624 = vmatprep.subr.mxu0 0.0
    %625 = vmatpush1.msra.mxu0 %v273
    %626 = vmatprep.subr.mxu0 0.0
    %627 = vmatpush1.msra.mxu0 %v274
    %628 = vmatprep.subr.mxu0 0.0
    %629 = vmatpush1.msra.mxu0 %v275
    %630 = vmatprep.subr.mxu0 0.0
    %631 = vmatpush1.msra.mxu0 %v276
    %632 = vmatprep.subr.mxu0 0.0
    %633 = vmatpush1.msra.mxu0 %v277
    %634 = vmatprep.subr.mxu0 0.0
    %635 = vmatpush1.msra.mxu0 %v278
    %636 = vmatprep.subr.mxu0 0.0
    %637 = vmatpush1.msra.mxu0 %v279
    %638 = vmatprep.subr.mxu0 0.0
    %639 = vmatpush1.msra.mxu0 %v280
    %640 = vmatprep.subr.mxu0 0.0
    %641 = vmatpush1.msra.mxu0 %v281
    %642 = vmatprep.subr.mxu0 0.0
    %643 = vmatpush1.msra.mxu0 %v282
    %644 = vmatprep.subr.mxu0 0.0
    %645 = vmatpush1.msra.mxu0 %v283
    %646 = vmatprep.mubr.f32.mxu0 %v363
    %647 = vmatmul.mubr.f32.gmra.mrb[0].mxu0 %v362
    %v648 = vpop.f32.mrb[0].mxu0
    %v649 = vadd.f32 %v579, %v648
    %v650 = vpop.f32.mrb[0].mxu0
    %651 = vdwg.mxu0
    %v652 = vld [vmem:[%s2] sm:$0x3]
    %v653 = vlaneseq
    %v654 = vshrl.u32 %v653, 7
    %v655 = vsub.s32 0, %v654
    %v656 = vrot.slane %v652, %v655
    %v657 = vadd.f32 %v155, %v656
    %v658 = vadd.f32 %v657, %v649
    %v659 = vmax.f32 %v658, 0.0
    %v660 = vrsqrt.pop %v659
    %v661 = vmul.f32 %v659, %v660
    %vm662 = vcmp.eq.f32.partialorder %v659, inf
    %v663 = vsel %vm662, %v659, %v661
    %vm664 = vcmp.eq.f32.partialorder %v659, 0.0
    %v665 = vand.u32 %v659, 2147483648
    %v666 = vsel %vm664, %v665, %v663
    %v667 = vsub.f32 0.0, %v666
    %v668 = vlaneseq
    %v669 = vshrl.u32 %v668, 7
    %v670 = vsub.s32 1, %v669
    %v671 = vrot.slane %v652, %v670
    %v672 = vmul.f32 %v667, %v671
    %v673 = vmul.f32 %v672, 1.442695
    %v674 = vpow.pop %v673
    %675 = vst [vmem:[#allocation7] sm:$0xff] %v674
    // Predicated region
    $region22: #{tpu_custom_call.1} parent=1 // pred_check
      _
    $region23: #{tpu_custom_call.1} parent=1 // pred_check_branch
      %677 = sbr.rel (0) target = $region25
    $region24: #{tpu_custom_call.1} parent=1 // pred_region
      %s679 = ssub.s32 128, 32
      %680 = vsyncadd [#allocation4], %s679
      %s681 = sshll.u32 [#allocation7], 4
      %s682 = int_to_ptr.vmem [resolvable:$true] %s681
      %687 = dma.vmem_to_hbm [thread:$0]  %s682, 32, %s3, [#allocation4], 32, 32, 2
    $region25: #{tpu_custom_call.1} parent=1 // pred_fallthru
      _
    // Predicated region
    $region26: #{tpu_custom_call.1} parent=1 // pred_check
      _
    $region27: #{tpu_custom_call.1} parent=1 // pred_check_branch
      %689 = sbr.rel (0) target = $region29
    $region28: #{tpu_custom_call.1} parent=1 // pred_region
      %690 = dma.done [#allocation4], 128
    $region29: #{tpu_custom_call.1} parent=1 // pred_fallthru
      _
    %691 = vsyncpa [#allocation3], 1
    %692 = vsyncpa [#allocation6], 1
    %693 = vsyncpa [#allocation4], 1

</llo_original>
